<compile_context>
chip_gen: v6e
topology: v6e:2x2x1
jax: 0.10.0
libtpu: 0.0.40
codegen_flags: <defaults>
</compile_context>

<pallas_src>
import jax
import jax.numpy as jnp
from jax.experimental import pallas as pl
from jax.experimental.pallas import tpu as pltpu
import numpy as np


def _make_lstmed_kernel(T, TB, H):
    """Kernel for static (seq_len, batch-tile, hidden)."""
    G = 4 * H

    def kernel(xp_ref, whh_e_ref, w_dec_ref, b_dec_ref, out_ref):
        # Weights / fused decoder constants (small, read once).
        whh_e = whh_e_ref[...]                          # (H, 4H)
        w_dec = w_dec_ref[...]                          # (H, 4H)
        b_dec = jnp.broadcast_to(b_dec_ref[...], (TB, G))  # broadcast hoisted

        def lstm_step(gates, c):
            # Full-width EUP activations, then lane slices for the combine.
            sig = jax.nn.sigmoid(gates)                 # (TB, 4H)
            th = jnp.tanh(gates)                        # (TB, 4H)
            i_g = sig[:, 0 * H:1 * H]
            f_g = sig[:, 1 * H:2 * H]
            g_g = th[:, 2 * H:3 * H]
            o_g = sig[:, 3 * H:4 * H]
            c_new = f_g * c + i_g * g_g
            h_new = o_g * jnp.tanh(c_new)
            return h_new, c_new

        h = jnp.zeros((TB, H), jnp.float32)
        c = jnp.zeros((TB, H), jnp.float32)

        # ---------------- encoder (input projection pre-computed) -----------
        for t in range(T):                              # fully unrolled
            xg = xp_ref[t]                              # (TB, 4H), lane-dense
            if t == 0:
                gates = xg                              # h == 0: skip dead matmul
            else:
                gates = jnp.dot(h, whh_e,
                                preferred_element_type=jnp.float32) + xg
            h, c = lstm_step(gates, c)

        # ------------- decoder: fused single-matmul recurrence --------------
        # Eval mode feeds its own output back:  out_t = h @ wout + bout,
        # gates = out_t @ wih_d + h @ whh_d + b_d = h @ w_dec + b_dec.
        # The hidden state is written straight to the lane-dense output slab;
        # the wout projection happens in the wrapper.
        for k in range(T):                              # fully unrolled
            i = T - 1 - k                               # reversed time index
            out_ref[:, i * H:(i + 1) * H] = h
            if k < T - 1:                               # last step's h unused
                gates = jnp.dot(h, w_dec,
                                preferred_element_type=jnp.float32) + b_dec
                h, c = lstm_step(gates, c)

    return kernel


def _pick_batch_tile(b_pad):
    """Largest sublane-aligned divisor; >=2 grid steps on v7x when possible."""
    cands = [c for c in (256, 128, 64, 32, 16, 8) if b_pad % c == 0]
    tb = cands[0]                                       # b_pad is a multiple of 8
    try:
        is_v7 = "v7" in jax.devices()[0].device_kind.lower()
    except Exception:
        is_v7 = False
    if is_v7 and b_pad // tb < 2:                       # feed both TensorCores
        smaller = [c for c in cands if b_pad // c >= 2]
        if smaller:
            tb = smaller[0]
    return tb


def lstmed_forward(x, params):
    """x: (B, T, F) batch-first float32 -> (B, T, F) reconstruction."""
    B, T, F = x.shape
    H = params["whh_e"].shape[0]

    # ---- non-recurrent projections hoisted to XLA (lane-dense kernel I/O) ---
    xp = jnp.einsum("btf,fg->btg", x, params["wih_e"],
                    preferred_element_type=jnp.float32) + params["b_e"]  # (B,T,4H)
    w_dec = jnp.dot(params["wout"], params["wih_d"],
                    preferred_element_type=jnp.float32) + params["whh_d"]  # (H,4H)
    b_dec = jnp.dot(params["bout"], params["wih_d"],
                    preferred_element_type=jnp.float32) + params["b_d"]    # (1,4H)

    # ---- pad batch to a multiple of 8 sublanes, go time-major ---------------
    B_pad = max(8, ((B + 7) // 8) * 8)
    if B_pad != B:
        xp = jnp.pad(xp, ((0, B_pad - B), (0, 0), (0, 0)))
    xp_t = jnp.transpose(xp, (1, 0, 2))                 # (T, B_pad, 4H)

    TB = _pick_batch_tile(B_pad)
    grid = (B_pad // TB,)

    def full_spec(shape):
        return pl.BlockSpec(shape, lambda b: (0,) * len(shape))

    kernel = _make_lstmed_kernel(T, TB, H)
    h_slab = pl.pallas_call(
        kernel,
        out_shape=jax.ShapeDtypeStruct((B_pad, T * H), jnp.float32),
        grid_spec=pltpu.PrefetchScalarGridSpec(
            num_scalar_prefetch=0,
            grid=grid,
            in_specs=[
                pl.BlockSpec((T, TB, 4 * H), lambda b: (0, b, 0)),  # xp (time-major)
                full_spec(params["whh_e"].shape),                    # (H, 4H)
                full_spec((H, 4 * H)),                               # w_dec
                full_spec((1, 4 * H)),                               # b_dec
            ],
            out_specs=pl.BlockSpec((TB, T * H), lambda b: (b, 0)),   # lane-dense slab
        ),
        compiler_params=pltpu.CompilerParams(
            dimension_semantics=("parallel",),
            vmem_limit_bytes=32 * 1024 * 1024,
        ),
    )(xp_t, params["whh_e"], w_dec, b_dec)

    # ---- deferred output projection in XLA ----------------------------------
    h_all = h_slab[:B].reshape(B, T, H)
    out = jnp.einsum("bth,hf->btf", h_all, params["wout"],
                     preferred_element_type=jnp.float32) + params["bout"]
    return out


def reference_forward(x, params):
    """Pure-JAX reference mirroring the PyTorch eval-mode forward."""
    B, T, F = x.shape
    H = params["whh_e"].shape[0]
    hi = jax.lax.Precision.HIGHEST

    def cell(xt, h, c, wih, whh, b):
        gates = (jnp.dot(xt, wih, precision=hi)
                 + jnp.dot(h, whh, precision=hi) + b)
        i_g = jax.nn.sigmoid(gates[:, 0 * H:1 * H])
        f_g = jax.nn.sigmoid(gates[:, 1 * H:2 * H])
        g_g = jnp.tanh(gates[:, 2 * H:3 * H])
        o_g = jax.nn.sigmoid(gates[:, 3 * H:4 * H])
        c_new = f_g * c + i_g * g_g
        return o_g * jnp.tanh(c_new), c_new

    h = jnp.zeros((B, H), jnp.float32)
    c = jnp.zeros((B, H), jnp.float32)
    for t in range(T):
        h, c = cell(x[:, t, :], h, c,
                    params["wih_e"], params["whh_e"], params["b_e"])
    outs = [None] * T
    for i in reversed(range(T)):
        o = jnp.dot(h, params["wout"], precision=hi) + params["bout"]
        outs[i] = o
        h, c = cell(o, h, c, params["wih_d"], params["whh_d"], params["b_d"])
    return jnp.stack(outs, axis=1)


def init_params(key, n_features, hidden_size):
    """Deterministic synthetic weights (PyTorch-style uniform(-1/sqrt(H), 1/sqrt(H)))."""
    F, H = n_features, hidden_size
    k = 1.0 / np.sqrt(H)
    ks = jax.random.split(key, 11)
    u = lambda kk, shape: jax.random.uniform(kk, shape, jnp.float32, -k, k)
    return {
        # encoder LSTM (weights stored pre-transposed: x @ W_ih^T == x @ wih)
        "wih_e": u(ks[0], (F, 4 * H)),
        "whh_e": u(ks[1], (H, 4 * H)),
        "b_e":   (u(ks[2], (1, 4 * H)) + u(ks[3], (1, 4 * H))),  # b_ih + b_hh
        # decoder LSTM
        "wih_d": u(ks[4], (F, 4 * H)),
        "whh_d": u(ks[5], (H, 4 * H)),
        "b_d":   (u(ks[6], (1, 4 * H)) + u(ks[7], (1, 4 * H))),
        # hidden2output Linear(H -> F)
        "wout":  u(ks[8], (H, F)),
        "bout":  u(ks[9], (1, F)),
    }


if __name__ == "__main__":
    B, T, F, H = 2, 8, 4, 32   # batch, seq_len, n_features, hidden_size

    key = jax.random.PRNGKey(0)
    k_x, k_p = jax.random.split(key)
    x = jax.random.normal(k_x, (B, T, F), jnp.float32)
    params = init_params(k_p, F, H)

    out = lstmed_forward(x, params)
    jax.block_until_ready(out)

    assert out.shape == (B, T, F)
    ref = reference_forward(x, params)
    np.testing.assert_allclose(np.asarray(out), np.asarray(ref),
                               rtol=1e-2, atol=1e-2)
    print("KERNEL_OK")
</pallas_src>

<mosaic_0001>
module attributes {stable_mosaic.version = 11 : i64} {
  func.func @kernel(%arg0: i32, %arg1: memref<8x8x128xf32, #tpu.memory_space<vmem>>, %arg2: memref<32x128xf32, #tpu.memory_space<vmem>>, %arg3: memref<32x128xf32, #tpu.memory_space<vmem>>, %arg4: memref<1x128xf32, #tpu.memory_space<vmem>>, %arg5: memref<8x256xf32, #tpu.memory_space<vmem>>) attributes {dimension_semantics = [#tpu.dimension_semantics<parallel>], iteration_bounds = array<i64: 1>, scalar_prefetch = 0 : i64, scratch_operands = 0 : i64, tpu.core_type = #tpu.core_type<tc>, window_params = [{transform_indices = @transform_0, window_bounds = array<i64: 8, 8, 128>}, {pipeline_mode = #tpu.pipeline_mode<synchronous>, transform_indices = @transform_1, window_bounds = array<i64: 32, 128>}, {pipeline_mode = #tpu.pipeline_mode<synchronous>, transform_indices = @transform_2, window_bounds = array<i64: 32, 128>}, {pipeline_mode = #tpu.pipeline_mode<synchronous>, transform_indices = @transform_3, window_bounds = array<i64: 1, 128>}, {transform_indices = @transform_4, window_bounds = array<i64: 8, 256>}]} {
    %c0 = arith.constant 0 : index
    %c0_0 = arith.constant 0 : index
    %0 = vector.load %arg2[%c0, %c0_0] : memref<32x128xf32, #tpu.memory_space<vmem>>, vector<32x128xf32>
    %c0_1 = arith.constant 0 : index
    %c0_2 = arith.constant 0 : index
    %1 = vector.load %arg3[%c0_1, %c0_2] : memref<32x128xf32, #tpu.memory_space<vmem>>, vector<32x128xf32>
    %c0_3 = arith.constant 0 : index
    %c0_4 = arith.constant 0 : index
    %2 = vector.load %arg4[%c0_3, %c0_4] : memref<1x128xf32, #tpu.memory_space<vmem>>, vector<1x128xf32>
    %3 = vector.shape_cast %2 : vector<1x128xf32> to vector<1x128xf32>
    %4 = vector.broadcast %3 : vector<1x128xf32> to vector<8x128xf32>
    %cst = arith.constant 0.000000e+00 : f32
    %5 = vector.broadcast %cst : f32 to vector<8x32xf32>
    %c0_5 = arith.constant 0 : index
    %c0_6 = arith.constant 0 : index
    %c0_7 = arith.constant 0 : index
    %6 = vector.load %arg1[%c0_5, %c0_6, %c0_7] : memref<8x8x128xf32, #tpu.memory_space<vmem>>, vector<1x8x128xf32>
    %7 = vector.shape_cast %6 : vector<1x8x128xf32> to vector<8x128xf32>
    %8 = arith.negf %7 : vector<8x128xf32>
    %9 = math.exp %8 : vector<8x128xf32>
    %cst_8 = arith.constant 1.000000e+00 : f32
    %10 = vector.broadcast %cst_8 : f32 to vector<8x128xf32>
    %11 = arith.addf %10, %9 : vector<8x128xf32>
    %12 = arith.divf %10, %11 : vector<8x128xf32>
    %13 = math.tanh %7 : vector<8x128xf32>
    %14 = vector.extract_strided_slice %12 {offsets = [0, 0], sizes = [8, 32], strides = [1, 1]} : vector<8x128xf32> to vector<8x32xf32>
    %15 = vector.extract_strided_slice %12 {offsets = [0, 32], sizes = [8, 32], strides = [1, 1]} : vector<8x128xf32> to vector<8x32xf32>
    %16 = vector.extract_strided_slice %13 {offsets = [0, 64], sizes = [8, 32], strides = [1, 1]} : vector<8x128xf32> to vector<8x32xf32>
    %17 = vector.extract_strided_slice %12 {offsets = [0, 96], sizes = [8, 32], strides = [1, 1]} : vector<8x128xf32> to vector<8x32xf32>
    %18 = arith.mulf %15, %5 : vector<8x32xf32>
    %19 = arith.mulf %14, %16 : vector<8x32xf32>
    %20 = arith.addf %18, %19 : vector<8x32xf32>
    %21 = math.tanh %20 : vector<8x32xf32>
    %22 = arith.mulf %17, %21 : vector<8x32xf32>
    %c1 = arith.constant 1 : index
    %c0_9 = arith.constant 0 : index
    %c0_10 = arith.constant 0 : index
    %23 = vector.load %arg1[%c1, %c0_9, %c0_10] : memref<8x8x128xf32, #tpu.memory_space<vmem>>, vector<1x8x128xf32>
    %24 = vector.shape_cast %23 : vector<1x8x128xf32> to vector<8x128xf32>
    %cst_11 = arith.constant dense<0.000000e+00> : vector<8x128xf32>
    %25 = tpu.matmul %22, %0, %cst_11 {dimension_numbers = #tpu.dot_dimension_numbers<[1], [0], [0], [1], [0, 0, 1, 1], [], []>} : vector<8x32xf32>, vector<32x128xf32>, vector<8x128xf32> -> vector<8x128xf32>
    %26 = arith.addf %25, %24 : vector<8x128xf32>
    %27 = arith.negf %26 : vector<8x128xf32>
    %28 = math.exp %27 : vector<8x128xf32>
    %cst_12 = arith.constant 1.000000e+00 : f32
    %29 = vector.broadcast %cst_12 : f32 to vector<8x128xf32>
    %30 = arith.addf %29, %28 : vector<8x128xf32>
    %31 = arith.divf %29, %30 : vector<8x128xf32>
    %32 = math.tanh %26 : vector<8x128xf32>
    %33 = vector.extract_strided_slice %31 {offsets = [0, 0], sizes = [8, 32], strides = [1, 1]} : vector<8x128xf32> to vector<8x32xf32>
    %34 = vector.extract_strided_slice %31 {offsets = [0, 32], sizes = [8, 32], strides = [1, 1]} : vector<8x128xf32> to vector<8x32xf32>
    %35 = vector.extract_strided_slice %32 {offsets = [0, 64], sizes = [8, 32], strides = [1, 1]} : vector<8x128xf32> to vector<8x32xf32>
    %36 = vector.extract_strided_slice %31 {offsets = [0, 96], sizes = [8, 32], strides = [1, 1]} : vector<8x128xf32> to vector<8x32xf32>
    %37 = arith.mulf %34, %20 : vector<8x32xf32>
    %38 = arith.mulf %33, %35 : vector<8x32xf32>
    %39 = arith.addf %37, %38 : vector<8x32xf32>
    %40 = math.tanh %39 : vector<8x32xf32>
    %41 = arith.mulf %36, %40 : vector<8x32xf32>
    %c2 = arith.constant 2 : index
    %c0_13 = arith.constant 0 : index
    %c0_14 = arith.constant 0 : index
    %42 = vector.load %arg1[%c2, %c0_13, %c0_14] : memref<8x8x128xf32, #tpu.memory_space<vmem>>, vector<1x8x128xf32>
    %43 = vector.shape_cast %42 : vector<1x8x128xf32> to vector<8x128xf32>
    %cst_15 = arith.constant dense<0.000000e+00> : vector<8x128xf32>
    %44 = tpu.matmul %41, %0, %cst_15 {dimension_numbers = #tpu.dot_dimension_numbers<[1], [0], [0], [1], [0, 0, 1, 1], [], []>} : vector<8x32xf32>, vector<32x128xf32>, vector<8x128xf32> -> vector<8x128xf32>
    %45 = arith.addf %44, %43 : vector<8x128xf32>
    %46 = arith.negf %45 : vector<8x128xf32>
    %47 = math.exp %46 : vector<8x128xf32>
    %cst_16 = arith.constant 1.000000e+00 : f32
    %48 = vector.broadcast %cst_16 : f32 to vector<8x128xf32>
    %49 = arith.addf %48, %47 : vector<8x128xf32>
    %50 = arith.divf %48, %49 : vector<8x128xf32>
    %51 = math.tanh %45 : vector<8x128xf32>
    %52 = vector.extract_strided_slice %50 {offsets = [0, 0], sizes = [8, 32], strides = [1, 1]} : vector<8x128xf32> to vector<8x32xf32>
    %53 = vector.extract_strided_slice %50 {offsets = [0, 32], sizes = [8, 32], strides = [1, 1]} : vector<8x128xf32> to vector<8x32xf32>
    %54 = vector.extract_strided_slice %51 {offsets = [0, 64], sizes = [8, 32], strides = [1, 1]} : vector<8x128xf32> to vector<8x32xf32>
    %55 = vector.extract_strided_slice %50 {offsets = [0, 96], sizes = [8, 32], strides = [1, 1]} : vector<8x128xf32> to vector<8x32xf32>
    %56 = arith.mulf %53, %39 : vector<8x32xf32>
    %57 = arith.mulf %52, %54 : vector<8x32xf32>
    %58 = arith.addf %56, %57 : vector<8x32xf32>
    %59 = math.tanh %58 : vector<8x32xf32>
    %60 = arith.mulf %55, %59 : vector<8x32xf32>
    %c3 = arith.constant 3 : index
    %c0_17 = arith.constant 0 : index
    %c0_18 = arith.constant 0 : index
    %61 = vector.load %arg1[%c3, %c0_17, %c0_18] : memref<8x8x128xf32, #tpu.memory_space<vmem>>, vector<1x8x128xf32>
    %62 = vector.shape_cast %61 : vector<1x8x128xf32> to vector<8x128xf32>
    %cst_19 = arith.constant dense<0.000000e+00> : vector<8x128xf32>
    %63 = tpu.matmul %60, %0, %cst_19 {dimension_numbers = #tpu.dot_dimension_numbers<[1], [0], [0], [1], [0, 0, 1, 1], [], []>} : vector<8x32xf32>, vector<32x128xf32>, vector<8x128xf32> -> vector<8x128xf32>
    %64 = arith.addf %63, %62 : vector<8x128xf32>
    %65 = arith.negf %64 : vector<8x128xf32>
    %66 = math.exp %65 : vector<8x128xf32>
    %cst_20 = arith.constant 1.000000e+00 : f32
    %67 = vector.broadcast %cst_20 : f32 to vector<8x128xf32>
    %68 = arith.addf %67, %66 : vector<8x128xf32>
    %69 = arith.divf %67, %68 : vector<8x128xf32>
    %70 = math.tanh %64 : vector<8x128xf32>
    %71 = vector.extract_strided_slice %69 {offsets = [0, 0], sizes = [8, 32], strides = [1, 1]} : vector<8x128xf32> to vector<8x32xf32>
    %72 = vector.extract_strided_slice %69 {offsets = [0, 32], sizes = [8, 32], strides = [1, 1]} : vector<8x128xf32> to vector<8x32xf32>
    %73 = vector.extract_strided_slice %70 {offsets = [0, 64], sizes = [8, 32], strides = [1, 1]} : vector<8x128xf32> to vector<8x32xf32>
    %74 = vector.extract_strided_slice %69 {offsets = [0, 96], sizes = [8, 32], strides = [1, 1]} : vector<8x128xf32> to vector<8x32xf32>
    %75 = arith.mulf %72, %58 : vector<8x32xf32>
    %76 = arith.mulf %71, %73 : vector<8x32xf32>
    %77 = arith.addf %75, %76 : vector<8x32xf32>
    %78 = math.tanh %77 : vector<8x32xf32>
    %79 = arith.mulf %74, %78 : vector<8x32xf32>
    %c4 = arith.constant 4 : index
    %c0_21 = arith.constant 0 : index
    %c0_22 = arith.constant 0 : index
    %80 = vector.load %arg1[%c4, %c0_21, %c0_22] : memref<8x8x128xf32, #tpu.memory_space<vmem>>, vector<1x8x128xf32>
    %81 = vector.shape_cast %80 : vector<1x8x128xf32> to vector<8x128xf32>
    %cst_23 = arith.constant dense<0.000000e+00> : vector<8x128xf32>
    %82 = tpu.matmul %79, %0, %cst_23 {dimension_numbers = #tpu.dot_dimension_numbers<[1], [0], [0], [1], [0, 0, 1, 1], [], []>} : vector<8x32xf32>, vector<32x128xf32>, vector<8x128xf32> -> vector<8x128xf32>
    %83 = arith.addf %82, %81 : vector<8x128xf32>
    %84 = arith.negf %83 : vector<8x128xf32>
    %85 = math.exp %84 : vector<8x128xf32>
    %cst_24 = arith.constant 1.000000e+00 : f32
    %86 = vector.broadcast %cst_24 : f32 to vector<8x128xf32>
    %87 = arith.addf %86, %85 : vector<8x128xf32>
    %88 = arith.divf %86, %87 : vector<8x128xf32>
    %89 = math.tanh %83 : vector<8x128xf32>
    %90 = vector.extract_strided_slice %88 {offsets = [0, 0], sizes = [8, 32], strides = [1, 1]} : vector<8x128xf32> to vector<8x32xf32>
    %91 = vector.extract_strided_slice %88 {offsets = [0, 32], sizes = [8, 32], strides = [1, 1]} : vector<8x128xf32> to vector<8x32xf32>
    %92 = vector.extract_strided_slice %89 {offsets = [0, 64], sizes = [8, 32], strides = [1, 1]} : vector<8x128xf32> to vector<8x32xf32>
    %93 = vector.extract_strided_slice %88 {offsets = [0, 96], sizes = [8, 32], strides = [1, 1]} : vector<8x128xf32> to vector<8x32xf32>
    %94 = arith.mulf %91, %77 : vector<8x32xf32>
    %95 = arith.mulf %90, %92 : vector<8x32xf32>
    %96 = arith.addf %94, %95 : vector<8x32xf32>
    %97 = math.tanh %96 : vector<8x32xf32>
    %98 = arith.mulf %93, %97 : vector<8x32xf32>
    %c5 = arith.constant 5 : index
    %c0_25 = arith.constant 0 : index
    %c0_26 = arith.constant 0 : index
    %99 = vector.load %arg1[%c5, %c0_25, %c0_26] : memref<8x8x128xf32, #tpu.memory_space<vmem>>, vector<1x8x128xf32>
    %100 = vector.shape_cast %99 : vector<1x8x128xf32> to vector<8x128xf32>
    %cst_27 = arith.constant dense<0.000000e+00> : vector<8x128xf32>
    %101 = tpu.matmul %98, %0, %cst_27 {dimension_numbers = #tpu.dot_dimension_numbers<[1], [0], [0], [1], [0, 0, 1, 1], [], []>} : vector<8x32xf32>, vector<32x128xf32>, vector<8x128xf32> -> vector<8x128xf32>
    %102 = arith.addf %101, %100 : vector<8x128xf32>
    %103 = arith.negf %102 : vector<8x128xf32>
    %104 = math.exp %103 : vector<8x128xf32>
    %cst_28 = arith.constant 1.000000e+00 : f32
    %105 = vector.broadcast %cst_28 : f32 to vector<8x128xf32>
    %106 = arith.addf %105, %104 : vector<8x128xf32>
    %107 = arith.divf %105, %106 : vector<8x128xf32>
    %108 = math.tanh %102 : vector<8x128xf32>
    %109 = vector.extract_strided_slice %107 {offsets = [0, 0], sizes = [8, 32], strides = [1, 1]} : vector<8x128xf32> to vector<8x32xf32>
    %110 = vector.extract_strided_slice %107 {offsets = [0, 32], sizes = [8, 32], strides = [1, 1]} : vector<8x128xf32> to vector<8x32xf32>
    %111 = vector.extract_strided_slice %108 {offsets = [0, 64], sizes = [8, 32], strides = [1, 1]} : vector<8x128xf32> to vector<8x32xf32>
    %112 = vector.extract_strided_slice %107 {offsets = [0, 96], sizes = [8, 32], strides = [1, 1]} : vector<8x128xf32> to vector<8x32xf32>
    %113 = arith.mulf %110, %96 : vector<8x32xf32>
    %114 = arith.mulf %109, %111 : vector<8x32xf32>
    %115 = arith.addf %113, %114 : vector<8x32xf32>
    %116 = math.tanh %115 : vector<8x32xf32>
    %117 = arith.mulf %112, %116 : vector<8x32xf32>
    %c6 = arith.constant 6 : index
    %c0_29 = arith.constant 0 : index
    %c0_30 = arith.constant 0 : index
    %118 = vector.load %arg1[%c6, %c0_29, %c0_30] : memref<8x8x128xf32, #tpu.memory_space<vmem>>, vector<1x8x128xf32>
    %119 = vector.shape_cast %118 : vector<1x8x128xf32> to vector<8x128xf32>
    %cst_31 = arith.constant dense<0.000000e+00> : vector<8x128xf32>
    %120 = tpu.matmul %117, %0, %cst_31 {dimension_numbers = #tpu.dot_dimension_numbers<[1], [0], [0], [1], [0, 0, 1, 1], [], []>} : vector<8x32xf32>, vector<32x128xf32>, vector<8x128xf32> -> vector<8x128xf32>
    %121 = arith.addf %120, %119 : vector<8x128xf32>
    %122 = arith.negf %121 : vector<8x128xf32>
    %123 = math.exp %122 : vector<8x128xf32>
    %cst_32 = arith.constant 1.000000e+00 : f32
    %124 = vector.broadcast %cst_32 : f32 to vector<8x128xf32>
    %125 = arith.addf %124, %123 : vector<8x128xf32>
    %126 = arith.divf %124, %125 : vector<8x128xf32>
    %127 = math.tanh %121 : vector<8x128xf32>
    %128 = vector.extract_strided_slice %126 {offsets = [0, 0], sizes = [8, 32], strides = [1, 1]} : vector<8x128xf32> to vector<8x32xf32>
    %129 = vector.extract_strided_slice %126 {offsets = [0, 32], sizes = [8, 32], strides = [1, 1]} : vector<8x128xf32> to vector<8x32xf32>
    %130 = vector.extract_strided_slice %127 {offsets = [0, 64], sizes = [8, 32], strides = [1, 1]} : vector<8x128xf32> to vector<8x32xf32>
    %131 = vector.extract_strided_slice %126 {offsets = [0, 96], sizes = [8, 32], strides = [1, 1]} : vector<8x128xf32> to vector<8x32xf32>
    %132 = arith.mulf %129, %115 : vector<8x32xf32>
    %133 = arith.mulf %128, %130 : vector<8x32xf32>
    %134 = arith.addf %132, %133 : vector<8x32xf32>
    %135 = math.tanh %134 : vector<8x32xf32>
    %136 = arith.mulf %131, %135 : vector<8x32xf32>
    %c7 = arith.constant 7 : index
    %c0_33 = arith.constant 0 : index
    %c0_34 = arith.constant 0 : index
    %137 = vector.load %arg1[%c7, %c0_33, %c0_34] : memref<8x8x128xf32, #tpu.memory_space<vmem>>, vector<1x8x128xf32>
    %138 = vector.shape_cast %137 : vector<1x8x128xf32> to vector<8x128xf32>
    %cst_35 = arith.constant dense<0.000000e+00> : vector<8x128xf32>
    %139 = tpu.matmul %136, %0, %cst_35 {dimension_numbers = #tpu.dot_dimension_numbers<[1], [0], [0], [1], [0, 0, 1, 1], [], []>} : vector<8x32xf32>, vector<32x128xf32>, vector<8x128xf32> -> vector<8x128xf32>
    %140 = arith.addf %139, %138 : vector<8x128xf32>
    %141 = arith.negf %140 : vector<8x128xf32>
    %142 = math.exp %141 : vector<8x128xf32>
    %cst_36 = arith.constant 1.000000e+00 : f32
    %143 = vector.broadcast %cst_36 : f32 to vector<8x128xf32>
    %144 = arith.addf %143, %142 : vector<8x128xf32>
    %145 = arith.divf %143, %144 : vector<8x128xf32>
    %146 = math.tanh %140 : vector<8x128xf32>
    %147 = vector.extract_strided_slice %145 {offsets = [0, 0], sizes = [8, 32], strides = [1, 1]} : vector<8x128xf32> to vector<8x32xf32>
    %148 = vector.extract_strided_slice %145 {offsets = [0, 32], sizes = [8, 32], strides = [1, 1]} : vector<8x128xf32> to vector<8x32xf32>
    %149 = vector.extract_strided_slice %146 {offsets = [0, 64], sizes = [8, 32], strides = [1, 1]} : vector<8x128xf32> to vector<8x32xf32>
    %150 = vector.extract_strided_slice %145 {offsets = [0, 96], sizes = [8, 32], strides = [1, 1]} : vector<8x128xf32> to vector<8x32xf32>
    %151 = arith.mulf %148, %134 : vector<8x32xf32>
    %152 = arith.mulf %147, %149 : vector<8x32xf32>
    %153 = arith.addf %151, %152 : vector<8x32xf32>
    %154 = math.tanh %153 : vector<8x32xf32>
    %155 = arith.mulf %150, %154 : vector<8x32xf32>
    %c0_37 = arith.constant 0 : index
    %c224 = arith.constant 224 : index
    %156 = vector.load %arg5[%c0_37, %c224] : memref<8x256xf32, #tpu.memory_space<vmem>>, vector<8x32xf32>
    tpu.vector_store %arg5[%c0_37, %c224], %155 {strides = array<i32>} : memref<8x256xf32, #tpu.memory_space<vmem>>, vector<8x32xf32>,
    %cst_38 = arith.constant dense<0.000000e+00> : vector<8x128xf32>
    %157 = tpu.matmul %155, %1, %cst_38 {dimension_numbers = #tpu.dot_dimension_numbers<[1], [0], [0], [1], [0, 0, 1, 1], [], []>} : vector<8x32xf32>, vector<32x128xf32>, vector<8x128xf32> -> vector<8x128xf32>
    %158 = arith.addf %157, %4 : vector<8x128xf32>
    %159 = arith.negf %158 : vector<8x128xf32>
    %160 = math.exp %159 : vector<8x128xf32>
    %cst_39 = arith.constant 1.000000e+00 : f32
    %161 = vector.broadcast %cst_39 : f32 to vector<8x128xf32>
    %162 = arith.addf %161, %160 : vector<8x128xf32>
    %163 = arith.divf %161, %162 : vector<8x128xf32>
    %164 = math.tanh %158 : vector<8x128xf32>
    %165 = vector.extract_strided_slice %163 {offsets = [0, 0], sizes = [8, 32], strides = [1, 1]} : vector<8x128xf32> to vector<8x32xf32>
    %166 = vector.extract_strided_slice %163 {offsets = [0, 32], sizes = [8, 32], strides = [1, 1]} : vector<8x128xf32> to vector<8x32xf32>
    %167 = vector.extract_strided_slice %164 {offsets = [0, 64], sizes = [8, 32], strides = [1, 1]} : vector<8x128xf32> to vector<8x32xf32>
    %168 = vector.extract_strided_slice %163 {offsets = [0, 96], sizes = [8, 32], strides = [1, 1]} : vector<8x128xf32> to vector<8x32xf32>
    %169 = arith.mulf %166, %153 : vector<8x32xf32>
    %170 = arith.mulf %165, %167 : vector<8x32xf32>
    %171 = arith.addf %169, %170 : vector<8x32xf32>
    %172 = math.tanh %171 : vector<8x32xf32>
    %173 = arith.mulf %168, %172 : vector<8x32xf32>
    %c0_40 = arith.constant 0 : index
    %c192 = arith.constant 192 : index
    %174 = vector.load %arg5[%c0_40, %c192] : memref<8x256xf32, #tpu.memory_space<vmem>>, vector<8x32xf32>
    tpu.vector_store %arg5[%c0_40, %c192], %173 {strides = array<i32>} : memref<8x256xf32, #tpu.memory_space<vmem>>, vector<8x32xf32>,
    %cst_41 = arith.constant dense<0.000000e+00> : vector<8x128xf32>
    %175 = tpu.matmul %173, %1, %cst_41 {dimension_numbers = #tpu.dot_dimension_numbers<[1], [0], [0], [1], [0, 0, 1, 1], [], []>} : vector<8x32xf32>, vector<32x128xf32>, vector<8x128xf32> -> vector<8x128xf32>
    %176 = arith.addf %175, %4 : vector<8x128xf32>
    %177 = arith.negf %176 : vector<8x128xf32>
    %178 = math.exp %177 : vector<8x128xf32>
    %cst_42 = arith.constant 1.000000e+00 : f32
    %179 = vector.broadcast %cst_42 : f32 to vector<8x128xf32>
    %180 = arith.addf %179, %178 : vector<8x128xf32>
    %181 = arith.divf %179, %180 : vector<8x128xf32>
    %182 = math.tanh %176 : vector<8x128xf32>
    %183 = vector.extract_strided_slice %181 {offsets = [0, 0], sizes = [8, 32], strides = [1, 1]} : vector<8x128xf32> to vector<8x32xf32>
    %184 = vector.extract_strided_slice %181 {offsets = [0, 32], sizes = [8, 32], strides = [1, 1]} : vector<8x128xf32> to vector<8x32xf32>
    %185 = vector.extract_strided_slice %182 {offsets = [0, 64], sizes = [8, 32], strides = [1, 1]} : vector<8x128xf32> to vector<8x32xf32>
    %186 = vector.extract_strided_slice %181 {offsets = [0, 96], sizes = [8, 32], strides = [1, 1]} : vector<8x128xf32> to vector<8x32xf32>
    %187 = arith.mulf %184, %171 : vector<8x32xf32>
    %188 = arith.mulf %183, %185 : vector<8x32xf32>
    %189 = arith.addf %187, %188 : vector<8x32xf32>
    %190 = math.tanh %189 : vector<8x32xf32>
    %191 = arith.mulf %186, %190 : vector<8x32xf32>
    %c0_43 = arith.constant 0 : index
    %c160 = arith.constant 160 : index
    %192 = vector.load %arg5[%c0_43, %c160] : memref<8x256xf32, #tpu.memory_space<vmem>>, vector<8x32xf32>
    tpu.vector_store %arg5[%c0_43, %c160], %191 {strides = array<i32>} : memref<8x256xf32, #tpu.memory_space<vmem>>, vector<8x32xf32>,
    %cst_44 = arith.constant dense<0.000000e+00> : vector<8x128xf32>
    %193 = tpu.matmul %191, %1, %cst_44 {dimension_numbers = #tpu.dot_dimension_numbers<[1], [0], [0], [1], [0, 0, 1, 1], [], []>} : vector<8x32xf32>, vector<32x128xf32>, vector<8x128xf32> -> vector<8x128xf32>
    %194 = arith.addf %193, %4 : vector<8x128xf32>
    %195 = arith.negf %194 : vector<8x128xf32>
    %196 = math.exp %195 : vector<8x128xf32>
    %cst_45 = arith.constant 1.000000e+00 : f32
    %197 = vector.broadcast %cst_45 : f32 to vector<8x128xf32>
    %198 = arith.addf %197, %196 : vector<8x128xf32>
    %199 = arith.divf %197, %198 : vector<8x128xf32>
    %200 = math.tanh %194 : vector<8x128xf32>
    %201 = vector.extract_strided_slice %199 {offsets = [0, 0], sizes = [8, 32], strides = [1, 1]} : vector<8x128xf32> to vector<8x32xf32>
    %202 = vector.extract_strided_slice %199 {offsets = [0, 32], sizes = [8, 32], strides = [1, 1]} : vector<8x128xf32> to vector<8x32xf32>
    %203 = vector.extract_strided_slice %200 {offsets = [0, 64], sizes = [8, 32], strides = [1, 1]} : vector<8x128xf32> to vector<8x32xf32>
    %204 = vector.extract_strided_slice %199 {offsets = [0, 96], sizes = [8, 32], strides = [1, 1]} : vector<8x128xf32> to vector<8x32xf32>
    %205 = arith.mulf %202, %189 : vector<8x32xf32>
    %206 = arith.mulf %201, %203 : vector<8x32xf32>
    %207 = arith.addf %205, %206 : vector<8x32xf32>
    %208 = math.tanh %207 : vector<8x32xf32>
    %209 = arith.mulf %204, %208 : vector<8x32xf32>
    %c0_46 = arith.constant 0 : index
    %c128 = arith.constant 128 : index
    %210 = vector.load %arg5[%c0_46, %c128] : memref<8x256xf32, #tpu.memory_space<vmem>>, vector<8x32xf32>
    tpu.vector_store %arg5[%c0_46, %c128], %209 {strides = array<i32>} : memref<8x256xf32, #tpu.memory_space<vmem>>, vector<8x32xf32>,
    %cst_47 = arith.constant dense<0.000000e+00> : vector<8x128xf32>
    %211 = tpu.matmul %209, %1, %cst_47 {dimension_numbers = #tpu.dot_dimension_numbers<[1], [0], [0], [1], [0, 0, 1, 1], [], []>} : vector<8x32xf32>, vector<32x128xf32>, vector<8x128xf32> -> vector<8x128xf32>
    %212 = arith.addf %211, %4 : vector<8x128xf32>
    %213 = arith.negf %212 : vector<8x128xf32>
    %214 = math.exp %213 : vector<8x128xf32>
    %cst_48 = arith.constant 1.000000e+00 : f32
    %215 = vector.broadcast %cst_48 : f32 to vector<8x128xf32>
    %216 = arith.addf %215, %214 : vector<8x128xf32>
    %217 = arith.divf %215, %216 : vector<8x128xf32>
    %218 = math.tanh %212 : vector<8x128xf32>
    %219 = vector.extract_strided_slice %217 {offsets = [0, 0], sizes = [8, 32], strides = [1, 1]} : vector<8x128xf32> to vector<8x32xf32>
    %220 = vector.extract_strided_slice %217 {offsets = [0, 32], sizes = [8, 32], strides = [1, 1]} : vector<8x128xf32> to vector<8x32xf32>
    %221 = vector.extract_strided_slice %218 {offsets = [0, 64], sizes = [8, 32], strides = [1, 1]} : vector<8x128xf32> to vector<8x32xf32>
    %222 = vector.extract_strided_slice %217 {offsets = [0, 96], sizes = [8, 32], strides = [1, 1]} : vector<8x128xf32> to vector<8x32xf32>
    %223 = arith.mulf %220, %207 : vector<8x32xf32>
    %224 = arith.mulf %219, %221 : vector<8x32xf32>
    %225 = arith.addf %223, %224 : vector<8x32xf32>
    %226 = math.tanh %225 : vector<8x32xf32>
    %227 = arith.mulf %222, %226 : vector<8x32xf32>
    %c0_49 = arith.constant 0 : index
    %c96 = arith.constant 96 : index
    %228 = vector.load %arg5[%c0_49, %c96] : memref<8x256xf32, #tpu.memory_space<vmem>>, vector<8x32xf32>
    tpu.vector_store %arg5[%c0_49, %c96], %227 {strides = array<i32>} : memref<8x256xf32, #tpu.memory_space<vmem>>, vector<8x32xf32>,
    %cst_50 = arith.constant dense<0.000000e+00> : vector<8x128xf32>
    %229 = tpu.matmul %227, %1, %cst_50 {dimension_numbers = #tpu.dot_dimension_numbers<[1], [0], [0], [1], [0, 0, 1, 1], [], []>} : vector<8x32xf32>, vector<32x128xf32>, vector<8x128xf32> -> vector<8x128xf32>
    %230 = arith.addf %229, %4 : vector<8x128xf32>
    %231 = arith.negf %230 : vector<8x128xf32>
    %232 = math.exp %231 : vector<8x128xf32>
    %cst_51 = arith.constant 1.000000e+00 : f32
    %233 = vector.broadcast %cst_51 : f32 to vector<8x128xf32>
    %234 = arith.addf %233, %232 : vector<8x128xf32>
    %235 = arith.divf %233, %234 : vector<8x128xf32>
    %236 = math.tanh %230 : vector<8x128xf32>
    %237 = vector.extract_strided_slice %235 {offsets = [0, 0], sizes = [8, 32], strides = [1, 1]} : vector<8x128xf32> to vector<8x32xf32>
    %238 = vector.extract_strided_slice %235 {offsets = [0, 32], sizes = [8, 32], strides = [1, 1]} : vector<8x128xf32> to vector<8x32xf32>
    %239 = vector.extract_strided_slice %236 {offsets = [0, 64], sizes = [8, 32], strides = [1, 1]} : vector<8x128xf32> to vector<8x32xf32>
    %240 = vector.extract_strided_slice %235 {offsets = [0, 96], sizes = [8, 32], strides = [1, 1]} : vector<8x128xf32> to vector<8x32xf32>
    %241 = arith.mulf %238, %225 : vector<8x32xf32>
    %242 = arith.mulf %237, %239 : vector<8x32xf32>
    %243 = arith.addf %241, %242 : vector<8x32xf32>
    %244 = math.tanh %243 : vector<8x32xf32>
    %245 = arith.mulf %240, %244 : vector<8x32xf32>
    %c0_52 = arith.constant 0 : index
    %c64 = arith.constant 64 : index
    %246 = vector.load %arg5[%c0_52, %c64] : memref<8x256xf32, #tpu.memory_space<vmem>>, vector<8x32xf32>
    tpu.vector_store %arg5[%c0_52, %c64], %245 {strides = array<i32>} : memref<8x256xf32, #tpu.memory_space<vmem>>, vector<8x32xf32>,
    %cst_53 = arith.constant dense<0.000000e+00> : vector<8x128xf32>
    %247 = tpu.matmul %245, %1, %cst_53 {dimension_numbers = #tpu.dot_dimension_numbers<[1], [0], [0], [1], [0, 0, 1, 1], [], []>} : vector<8x32xf32>, vector<32x128xf32>, vector<8x128xf32> -> vector<8x128xf32>
    %248 = arith.addf %247, %4 : vector<8x128xf32>
    %249 = arith.negf %248 : vector<8x128xf32>
    %250 = math.exp %249 : vector<8x128xf32>
    %cst_54 = arith.constant 1.000000e+00 : f32
    %251 = vector.broadcast %cst_54 : f32 to vector<8x128xf32>
    %252 = arith.addf %251, %250 : vector<8x128xf32>
    %253 = arith.divf %251, %252 : vector<8x128xf32>
    %254 = math.tanh %248 : vector<8x128xf32>
    %255 = vector.extract_strided_slice %253 {offsets = [0, 0], sizes = [8, 32], strides = [1, 1]} : vector<8x128xf32> to vector<8x32xf32>
    %256 = vector.extract_strided_slice %253 {offsets = [0, 32], sizes = [8, 32], strides = [1, 1]} : vector<8x128xf32> to vector<8x32xf32>
    %257 = vector.extract_strided_slice %254 {offsets = [0, 64], sizes = [8, 32], strides = [1, 1]} : vector<8x128xf32> to vector<8x32xf32>
    %258 = vector.extract_strided_slice %253 {offsets = [0, 96], sizes = [8, 32], strides = [1, 1]} : vector<8x128xf32> to vector<8x32xf32>
    %259 = arith.mulf %256, %243 : vector<8x32xf32>
    %260 = arith.mulf %255, %257 : vector<8x32xf32>
    %261 = arith.addf %259, %260 : vector<8x32xf32>
    %262 = math.tanh %261 : vector<8x32xf32>
    %263 = arith.mulf %258, %262 : vector<8x32xf32>
    %c0_55 = arith.constant 0 : index
    %c32 = arith.constant 32 : index
    %264 = vector.load %arg5[%c0_55, %c32] : memref<8x256xf32, #tpu.memory_space<vmem>>, vector<8x32xf32>
    tpu.vector_store %arg5[%c0_55, %c32], %263 {strides = array<i32>} : memref<8x256xf32, #tpu.memory_space<vmem>>, vector<8x32xf32>,
    %cst_56 = arith.constant dense<0.000000e+00> : vector<8x128xf32>
    %265 = tpu.matmul %263, %1, %cst_56 {dimension_numbers = #tpu.dot_dimension_numbers<[1], [0], [0], [1], [0, 0, 1, 1], [], []>} : vector<8x32xf32>, vector<32x128xf32>, vector<8x128xf32> -> vector<8x128xf32>
    %266 = arith.addf %265, %4 : vector<8x128xf32>
    %267 = arith.negf %266 : vector<8x128xf32>
    %268 = math.exp %267 : vector<8x128xf32>
    %cst_57 = arith.constant 1.000000e+00 : f32
    %269 = vector.broadcast %cst_57 : f32 to vector<8x128xf32>
    %270 = arith.addf %269, %268 : vector<8x128xf32>
    %271 = arith.divf %269, %270 : vector<8x128xf32>
    %272 = math.tanh %266 : vector<8x128xf32>
    %273 = vector.extract_strided_slice %271 {offsets = [0, 0], sizes = [8, 32], strides = [1, 1]} : vector<8x128xf32> to vector<8x32xf32>
    %274 = vector.extract_strided_slice %271 {offsets = [0, 32], sizes = [8, 32], strides = [1, 1]} : vector<8x128xf32> to vector<8x32xf32>
    %275 = vector.extract_strided_slice %272 {offsets = [0, 64], sizes = [8, 32], strides = [1, 1]} : vector<8x128xf32> to vector<8x32xf32>
    %276 = vector.extract_strided_slice %271 {offsets = [0, 96], sizes = [8, 32], strides = [1, 1]} : vector<8x128xf32> to vector<8x32xf32>
    %277 = arith.mulf %274, %261 : vector<8x32xf32>
    %278 = arith.mulf %273, %275 : vector<8x32xf32>
    %279 = arith.addf %277, %278 : vector<8x32xf32>
    %280 = math.tanh %279 : vector<8x32xf32>
    %281 = arith.mulf %276, %280 : vector<8x32xf32>
    %c0_58 = arith.constant 0 : index
    %c0_59 = arith.constant 0 : index
    %282 = vector.load %arg5[%c0_58, %c0_59] : memref<8x256xf32, #tpu.memory_space<vmem>>, vector<8x32xf32>
    tpu.vector_store %arg5[%c0_58, %c0_59], %281 {strides = array<i32>} : memref<8x256xf32, #tpu.memory_space<vmem>>, vector<8x32xf32>,
    return
  }
  func.func @transform_0(%arg0: i32) -> (i32, i32, i32) {
    %c0_i32 = arith.constant 0 : i32
    %c0_i32_0 = arith.constant 0 : i32
    %c0_i32_1 = arith.constant 0 : i32
    return %c0_i32, %arg0, %c0_i32_0 : i32, i32, i32
  }
  func.func @transform_1(%arg0: i32) -> (i32, i32) {
    %c0_i32 = arith.constant 0 : i32
    %c0_i32_0 = arith.constant 0 : i32
    %c0_i32_1 = arith.constant 0 : i32
    return %c0_i32, %c0_i32_0 : i32, i32
  }
  func.func @transform_2(%arg0: i32) -> (i32, i32) {
    %c0_i32 = arith.constant 0 : i32
    %c0_i32_0 = arith.constant 0 : i32
    %c0_i32_1 = arith.constant 0 : i32
    return %c0_i32, %c0_i32_0 : i32, i32
  }
  func.func @transform_3(%arg0: i32) -> (i32, i32) {
    %c0_i32 = arith.constant 0 : i32
    %c0_i32_0 = arith.constant 0 : i32
    %c0_i32_1 = arith.constant 0 : i32
    return %c0_i32, %c0_i32_0 : i32, i32
  }
  func.func @transform_4(%arg0: i32) -> (i32, i32) {
    %c0_i32 = arith.constant 0 : i32
    %c0_i32_0 = arith.constant 0 : i32
    return %arg0, %c0_i32 : i32, i32
  }
}

</mosaic_0001>

<llo_original>
// kernel: tpu_custom_call.1
$region0: #{tpu_custom_call.1}
  #allocation0 [shape = 'u32[]', space=smem, size = 0x4, offset = 0x4, fixed_abs, tag = 'smem constant byte address 0x4 - core index']
  #allocation1 [shape = 'u32[144,128]{1,0:T(1,128)}', space=vmem, size = 0x12000, scoped, tag = 'internal scratch']
  %s0 = inlined_call_operand.hbm [shape: f32[8,8,128], index: 0, kind: input, shape index: {}]
  %s1 = inlined_call_operand.hbm [shape: f32[32,128], index: 1, kind: input, shape index: {}]
  %s2 = inlined_call_operand.hbm [shape: f32[32,128], index: 2, kind: input, shape index: {}]
  %s3 = inlined_call_operand.vmem [shape: f32[1,128], index: 3, kind: input, shape index: {}]
  %s4 = inlined_call_operand.hbm [shape: f32[8,256], index: 4, kind: output, shape index: {}]
  %s5 = sld [smem:[#allocation0]]
  $region38: #{tpu_custom_call.1} parent=0
    _
  %s7 = ssub.s32 1, %s5
  %s8 = scalar_select 0, %s7, %s5
  $region1: #{tpu_custom_call.1} parent=0
    #allocation2 [shape = 'u8[32768]{0}', space=vmem, size = 0x8000, scoped, tag = 'input window, operand 0, single buffered']
    #allocation3 [shape = 's32[1]{0}', space=sflag, size = 0x4, scoped, tag = 'scoped memory for tpu_custom_call.1']
    #allocation4 [shape = 's32[1]{0}', space=sflag, size = 0x4, scoped, tag = 'scoped memory for tpu_custom_call.1']
    #allocation5 [shape = 'u8[16384]{0}', space=vmem, size = 0x4000, scoped, tag = 'input window, operand 1, single buffered']
    #allocation6 [shape = 's32[1]{0}', space=sflag, size = 0x4, scoped, tag = 'scoped memory for tpu_custom_call.1']
    #allocation7 [shape = 'u8[16384]{0}', space=vmem, size = 0x4000, scoped, tag = 'input window, operand 2, single buffered']
    #allocation8 [shape = 'u8[8192]{0}', space=vmem, size = 0x2000, scoped, tag = 'output window, operand 0, single buffered']
    %9 = vsyncpa [#allocation3], 0
    %10 = vsyncpa [#allocation6], 0
    %11 = vsyncpa [#allocation4], 0
    // Predicated region
    $region2: #{tpu_custom_call.1} parent=1 // pred_check
      _
    $region3: #{tpu_custom_call.1} parent=1 // pred_check_branch
      %13 = sbr.rel (0) target = $region5
    $region4: #{tpu_custom_call.1} parent=1 // pred_region
      %s15 = ssub.s32 1024, 1024
      %16 = vsyncadd [#allocation3], %s15
      %s17 = sshll.u32 [#allocation2], 4
      %s18 = int_to_ptr.vmem [resolvable:$true] %s17
      %23 = dma.hbm_to_vmem [thread:$0]  %s0, 1024, %s18, [#allocation3], 128, 128, 8
    $region5: #{tpu_custom_call.1} parent=1 // pred_fallthru
      _
    // Predicated region
    $region6: #{tpu_custom_call.1} parent=1 // pred_check
      _
    $region7: #{tpu_custom_call.1} parent=1 // pred_check_branch
      %25 = sbr.rel (0) target = $region9
    $region8: #{tpu_custom_call.1} parent=1 // pred_region
      %s27 = ssub.s32 512, 512
      %28 = vsyncadd [#allocation6], %s27
      %s29 = sshll.u32 [#allocation5], 4
      %s30 = int_to_ptr.vmem [resolvable:$true] %s29
      %35 = dma.hbm_to_vmem [thread:$0]  %s1, 512, %s30, [#allocation6], 128, 128, 8
    $region9: #{tpu_custom_call.1} parent=1 // pred_fallthru
      _
    // Predicated region
    $region10: #{tpu_custom_call.1} parent=1 // pred_check
      _
    $region11: #{tpu_custom_call.1} parent=1 // pred_check_branch
      %37 = sbr.rel (0) target = $region13
    $region12: #{tpu_custom_call.1} parent=1 // pred_region
      %s39 = ssub.s32 512, 512
      %40 = vsyncadd [#allocation6], %s39
      %s41 = sshll.u32 [#allocation7], 4
      %s42 = int_to_ptr.vmem [resolvable:$true] %s41
      %47 = dma.hbm_to_vmem [thread:$0]  %s2, 512, %s42, [#allocation6], 128, 128, 8
    $region13: #{tpu_custom_call.1} parent=1 // pred_fallthru
      _
    // Predicated region
    $region14: #{tpu_custom_call.1} parent=1 // pred_check
      _
    $region15: #{tpu_custom_call.1} parent=1 // pred_check_branch
      %49 = sbr.rel (0) target = $region17
    $region16: #{tpu_custom_call.1} parent=1 // pred_region
      _
    $region17: #{tpu_custom_call.1} parent=1 // pred_fallthru
      _
    // Predicated region
    $region18: #{tpu_custom_call.1} parent=1 // pred_check
      _
    $region19: #{tpu_custom_call.1} parent=1 // pred_check_branch
      %51 = sbr.rel (0) target = $region21
    $region20: #{tpu_custom_call.1} parent=1 // pred_region
      %52 = dma.done [#allocation3], 1024
    $region21: #{tpu_custom_call.1} parent=1 // pred_fallthru
      _
    // Predicated region
    $region22: #{tpu_custom_call.1} parent=1 // pred_check
      _
    $region23: #{tpu_custom_call.1} parent=1 // pred_check_branch
      %54 = sbr.rel (0) target = $region25
    $region24: #{tpu_custom_call.1} parent=1 // pred_region
      %55 = dma.done [#allocation6], 512
    $region25: #{tpu_custom_call.1} parent=1 // pred_fallthru
      _
    // Predicated region
    $region26: #{tpu_custom_call.1} parent=1 // pred_check
      _
    $region27: #{tpu_custom_call.1} parent=1 // pred_check_branch
      %57 = sbr.rel (0) target = $region29
    $region28: #{tpu_custom_call.1} parent=1 // pred_region
      %58 = dma.done [#allocation6], 512
    $region29: #{tpu_custom_call.1} parent=1 // pred_fallthru
      _
    %v59 = vld [vmem:[#allocation5] sm:$0xff]
    %v60 = vld [vmem:[#allocation5 + $0x8] sm:$0xff]
    %v61 = vld [vmem:[#allocation5 + $0x10] sm:$0xff]
    %v62 = vld [vmem:[#allocation5 + $0x18] sm:$0xff]
    %v63 = vld [vmem:[#allocation7] sm:$0xff]
    %v64 = vld [vmem:[#allocation7 + $0x8] sm:$0xff]
    %v65 = vld [vmem:[#allocation7 + $0x10] sm:$0xff]
    %v66 = vld [vmem:[#allocation7 + $0x18] sm:$0xff]
    %v67 = vld [vmem:[%s3] sm:$0x1]
    %v69 = vlaneseq
    %v70 = vshrl.u32 %v69, 7
    %v71 = vsub.s32 0, %v70
    %v72 = vrot.slane %v67, %v71
    %v74 = vld [vmem:[#allocation2] sm:$0xff]
    %v75 = vxor.u32 %v74, 2147483648
    %v76 = vmul.f32 %v75, 1.442695
    %v77 = vpow.pop %v76
    %v78 = vadd.f32 %v77, 1.0
    %v79 = vrcp.pop %v78
    %v80 = vmul.f32 1.0, %v79
    %v81 = vtanh.pop %v74
    %v82 = vmul.f32 %v80, 0.0
    %84 = vrot.lane.b32.xlu0 %v81, 64
    %v85 = vpop.permute.xlu0 %84
    %v87 = vmul.f32 %v80, %v85
    %89 = vrot.lane.b32.xlu0 %v87, 32
    %v90 = vpop.permute.xlu0 %89
    %v92 = vadd.f32 %v82, %v90
    %v93 = vtanh.pop %v92
    %95 = vrot.lane.b32.xlu0 %v93, 64
    %v96 = vpop.permute.xlu0 %95
    %v98 = vmul.f32 %v80, %v96
    %s99 = scalar_lea.vmem [#allocation2], 8
    %v100 = vld [vmem:[%s99] sm:$0xff]
    %102 = vrot.lane.b32.xlu0 %v98, 32
    %v103 = vpop.permute.xlu0 %102
    %vm104 = vcmask 261120
    %v105 = vsel %vm104, %v103, 0
    %107 = vmatprep.subr.mxu0 0.0
    %108 = vmatpush1.msra.mxu0 0.0
    %109 = vmatprep.subr.mxu0 0.0
    %110 = vmatpush1.msra.mxu0 0.0
    %111 = vmatprep.subr.mxu0 0.0
    %112 = vmatpush1.msra.mxu0 0.0
    %113 = vmatprep.subr.mxu0 0.0
    %114 = vmatpush1.msra.mxu0 0.0
    %115 = vmatprep.subr.mxu0 0.0
    %116 = vmatpush1.msra.mxu0 0.0
    %117 = vmatprep.subr.mxu0 0.0
    %118 = vmatpush1.msra.mxu0 0.0
    %119 = vmatprep.subr.mxu0 0.0
    %120 = vmatpush1.msra.mxu0 0.0
    %121 = vmatprep.subr.mxu0 0.0
    %122 = vmatpush1.msra.mxu0 0.0
    %123 = vmatprep.subr.mxu0 0.0
    %124 = vmatpush1.msra.mxu0 0.0
    %125 = vmatprep.subr.mxu0 0.0
    %126 = vmatpush1.msra.mxu0 0.0
    %127 = vmatprep.subr.mxu0 0.0
    %128 = vmatpush1.msra.mxu0 0.0
    %129 = vmatprep.subr.mxu0 0.0
    %130 = vmatpush1.msra.mxu0 0.0
    %131 = vmatprep.subr.mxu0 0.0
    %132 = vmatpush1.msra.mxu0 %v62
    %133 = vmatprep.subr.mxu0 0.0
    %134 = vmatpush1.msra.mxu0 %v61
    %135 = vmatprep.subr.mxu0 0.0
    %136 = vmatpush1.msra.mxu0 %v60
    %137 = vmatprep.subr.mxu0 0.0
    %138 = vmatpush1.msra.mxu0 %v59
    %139 = vmatprep.subr.mxu0 0.0
    %140 = vmatpush2.msra.mxu0 0.0
    %141 = vmatprep.subr.mxu0 0.0
    %142 = vmatpush2.msra.mxu0 0.0
    %143 = vmatprep.subr.mxu0 0.0
    %144 = vmatpush2.msra.mxu0 0.0
    %145 = vmatprep.subr.mxu0 0.0
    %146 = vmatpush2.msra.mxu0 0.0
    %147 = vmatprep.subr.mxu0 0.0
    %148 = vmatpush2.msra.mxu0 0.0
    %149 = vmatprep.subr.mxu0 0.0
    %150 = vmatpush2.msra.mxu0 0.0
    %151 = vmatprep.subr.mxu0 0.0
    %152 = vmatpush2.msra.mxu0 0.0
    %153 = vmatprep.subr.mxu0 0.0
    %154 = vmatpush2.msra.mxu0 0.0
    %155 = vmatprep.subr.mxu0 0.0
    %156 = vmatpush2.msra.mxu0 0.0
    %157 = vmatprep.subr.mxu0 0.0
    %158 = vmatpush2.msra.mxu0 0.0
    %159 = vmatprep.subr.mxu0 0.0
    %160 = vmatpush2.msra.mxu0 0.0
    %161 = vmatprep.subr.mxu0 0.0
    %162 = vmatpush2.msra.mxu0 0.0
    %163 = vmatprep.subr.mxu0 0.0
    %164 = vmatpush2.msra.mxu0 0.0
    %165 = vmatprep.subr.mxu0 0.0
    %166 = vmatpush2.msra.mxu0 0.0
    %167 = vmatprep.subr.mxu0 0.0
    %168 = vmatpush2.msra.mxu0 0.0
    %169 = vmatprep.subr.mxu0 0.0
    %170 = vmatpush2.msra.mxu0 0.0
    %171 = vmatprep.mubr.f32.mxu0 0.0
    %172 = vmatmul.mubr.f32.gmra.mxu0 %v105
    %v173 = vpop.f32.mrf.mxu0
    %v174 = vadd.f32 %v100, %v173
    %v175 = vpop.f32.mrf.mxu0
    %176 = vdwg.mxu0
    %v177 = vxor.u32 %v174, 2147483648
    %v178 = vmul.f32 %v177, 1.442695
    %v179 = vpow.pop %v178
    %v180 = vadd.f32 %v179, 1.0
    %v181 = vrcp.pop %v180
    %v182 = vmul.f32 1.0, %v181
    %v183 = vtanh.pop %v174
    %v184 = vmul.f32 %v182, %v92
    %186 = vrot.lane.b32.xlu0 %v183, 64
    %v187 = vpop.permute.xlu0 %186
    %v189 = vmul.f32 %v182, %v187
    %191 = vrot.lane.b32.xlu0 %v189, 32
    %v192 = vpop.permute.xlu0 %191
    %v194 = vadd.f32 %v184, %v192
    %v195 = vtanh.pop %v194
    %197 = vrot.lane.b32.xlu0 %v195, 64
    %v198 = vpop.permute.xlu0 %197
    %v200 = vmul.f32 %v182, %v198
    %s201 = scalar_lea.vmem [#allocation2], 16
    %v202 = vld [vmem:[%s201] sm:$0xff]
    %204 = vrot.lane.b32.xlu0 %v200, 32
    %v205 = vpop.permute.xlu0 %204
    %v206 = vsel %vm104, %v205, 0
    %208 = vmatprep.subr.mxu0 0.0
    %209 = vmatpush1.msra.mxu0 0.0
    %210 = vmatprep.subr.mxu0 0.0
    %211 = vmatpush1.msra.mxu0 0.0
    %212 = vmatprep.subr.mxu0 0.0
    %213 = vmatpush1.msra.mxu0 0.0
    %214 = vmatprep.subr.mxu0 0.0
    %215 = vmatpush1.msra.mxu0 0.0
    %216 = vmatprep.subr.mxu0 0.0
    %217 = vmatpush1.msra.mxu0 0.0
    %218 = vmatprep.subr.mxu0 0.0
    %219 = vmatpush1.msra.mxu0 0.0
    %220 = vmatprep.subr.mxu0 0.0
    %221 = vmatpush1.msra.mxu0 0.0
    %222 = vmatprep.subr.mxu0 0.0
    %223 = vmatpush1.msra.mxu0 0.0
    %224 = vmatprep.subr.mxu0 0.0
    %225 = vmatpush1.msra.mxu0 0.0
    %226 = vmatprep.subr.mxu0 0.0
    %227 = vmatpush1.msra.mxu0 0.0
    %228 = vmatprep.subr.mxu0 0.0
    %229 = vmatpush1.msra.mxu0 0.0
    %230 = vmatprep.subr.mxu0 0.0
    %231 = vmatpush1.msra.mxu0 0.0
    %232 = vmatprep.subr.mxu0 0.0
    %233 = vmatpush1.msra.mxu0 %v62
    %234 = vmatprep.subr.mxu0 0.0
    %235 = vmatpush1.msra.mxu0 %v61
    %236 = vmatprep.subr.mxu0 0.0
    %237 = vmatpush1.msra.mxu0 %v60
    %238 = vmatprep.subr.mxu0 0.0
    %239 = vmatpush1.msra.mxu0 %v59
    %240 = vmatprep.subr.mxu0 0.0
    %241 = vmatpush2.msra.mxu0 0.0
    %242 = vmatprep.subr.mxu0 0.0
    %243 = vmatpush2.msra.mxu0 0.0
    %244 = vmatprep.subr.mxu0 0.0
    %245 = vmatpush2.msra.mxu0 0.0
    %246 = vmatprep.subr.mxu0 0.0
    %247 = vmatpush2.msra.mxu0 0.0
    %248 = vmatprep.subr.mxu0 0.0
    %249 = vmatpush2.msra.mxu0 0.0
    %250 = vmatprep.subr.mxu0 0.0
    %251 = vmatpush2.msra.mxu0 0.0
    %252 = vmatprep.subr.mxu0 0.0
    %253 = vmatpush2.msra.mxu0 0.0
    %254 = vmatprep.subr.mxu0 0.0
    %255 = vmatpush2.msra.mxu0 0.0
    %256 = vmatprep.subr.mxu0 0.0
    %257 = vmatpush2.msra.mxu0 0.0
    %258 = vmatprep.subr.mxu0 0.0
    %259 = vmatpush2.msra.mxu0 0.0
    %260 = vmatprep.subr.mxu0 0.0
    %261 = vmatpush2.msra.mxu0 0.0
    %262 = vmatprep.subr.mxu0 0.0
    %263 = vmatpush2.msra.mxu0 0.0
    %264 = vmatprep.subr.mxu0 0.0
    %265 = vmatpush2.msra.mxu0 0.0
    %266 = vmatprep.subr.mxu0 0.0
    %267 = vmatpush2.msra.mxu0 0.0
    %268 = vmatprep.subr.mxu0 0.0
    %269 = vmatpush2.msra.mxu0 0.0
    %270 = vmatprep.subr.mxu0 0.0
    %271 = vmatpush2.msra.mxu0 0.0
    %272 = vmatprep.mubr.f32.mxu0 0.0
    %273 = vmatmul.mubr.f32.gmra.mxu0 %v206
    %v274 = vpop.f32.mrf.mxu0
    %v275 = vadd.f32 %v202, %v274
    %v276 = vpop.f32.mrf.mxu0
    %277 = vdwg.mxu0
    %v278 = vxor.u32 %v275, 2147483648
    %v279 = vmul.f32 %v278, 1.442695
    %v280 = vpow.pop %v279
    %v281 = vadd.f32 %v280, 1.0
    %v282 = vrcp.pop %v281
    %v283 = vmul.f32 1.0, %v282
    %v284 = vtanh.pop %v275
    %v285 = vmul.f32 %v283, %v194
    %287 = vrot.lane.b32.xlu0 %v284, 64
    %v288 = vpop.permute.xlu0 %287
    %v290 = vmul.f32 %v283, %v288
    %292 = vrot.lane.b32.xlu0 %v290, 32
    %v293 = vpop.permute.xlu0 %292
    %v295 = vadd.f32 %v285, %v293
    %v296 = vtanh.pop %v295
    %298 = vrot.lane.b32.xlu0 %v296, 64
    %v299 = vpop.permute.xlu0 %298
    %v301 = vmul.f32 %v283, %v299
    %s302 = scalar_lea.vmem [#allocation2], 24
    %v303 = vld [vmem:[%s302] sm:$0xff]
    %305 = vrot.lane.b32.xlu0 %v301, 32
    %v306 = vpop.permute.xlu0 %305
    %v307 = vsel %vm104, %v306, 0
    %309 = vmatprep.subr.mxu0 0.0
    %310 = vmatpush1.msra.mxu0 0.0
    %311 = vmatprep.subr.mxu0 0.0
    %312 = vmatpush1.msra.mxu0 0.0
    %313 = vmatprep.subr.mxu0 0.0
    %314 = vmatpush1.msra.mxu0 0.0
    %315 = vmatprep.subr.mxu0 0.0
    %316 = vmatpush1.msra.mxu0 0.0
    %317 = vmatprep.subr.mxu0 0.0
    %318 = vmatpush1.msra.mxu0 0.0
    %319 = vmatprep.subr.mxu0 0.0
    %320 = vmatpush1.msra.mxu0 0.0
    %321 = vmatprep.subr.mxu0 0.0
    %322 = vmatpush1.msra.mxu0 0.0
    %323 = vmatprep.subr.mxu0 0.0
    %324 = vmatpush1.msra.mxu0 0.0
    %325 = vmatprep.subr.mxu0 0.0
    %326 = vmatpush1.msra.mxu0 0.0
    %327 = vmatprep.subr.mxu0 0.0
    %328 = vmatpush1.msra.mxu0 0.0
    %329 = vmatprep.subr.mxu0 0.0
    %330 = vmatpush1.msra.mxu0 0.0
    %331 = vmatprep.subr.mxu0 0.0
    %332 = vmatpush1.msra.mxu0 0.0
    %333 = vmatprep.subr.mxu0 0.0
    %334 = vmatpush1.msra.mxu0 %v62
    %335 = vmatprep.subr.mxu0 0.0
    %336 = vmatpush1.msra.mxu0 %v61
    %337 = vmatprep.subr.mxu0 0.0
    %338 = vmatpush1.msra.mxu0 %v60
    %339 = vmatprep.subr.mxu0 0.0
    %340 = vmatpush1.msra.mxu0 %v59
    %341 = vmatprep.subr.mxu0 0.0
    %342 = vmatpush2.msra.mxu0 0.0
    %343 = vmatprep.subr.mxu0 0.0
    %344 = vmatpush2.msra.mxu0 0.0
    %345 = vmatprep.subr.mxu0 0.0
    %346 = vmatpush2.msra.mxu0 0.0
    %347 = vmatprep.subr.mxu0 0.0
    %348 = vmatpush2.msra.mxu0 0.0
    %349 = vmatprep.subr.mxu0 0.0
    %350 = vmatpush2.msra.mxu0 0.0
    %351 = vmatprep.subr.mxu0 0.0
    %352 = vmatpush2.msra.mxu0 0.0
    %353 = vmatprep.subr.mxu0 0.0
    %354 = vmatpush2.msra.mxu0 0.0
    %355 = vmatprep.subr.mxu0 0.0
    %356 = vmatpush2.msra.mxu0 0.0
    %357 = vmatprep.subr.mxu0 0.0
    %358 = vmatpush2.msra.mxu0 0.0
    %359 = vmatprep.subr.mxu0 0.0
    %360 = vmatpush2.msra.mxu0 0.0
    %361 = vmatprep.subr.mxu0 0.0
    %362 = vmatpush2.msra.mxu0 0.0
    %363 = vmatprep.subr.mxu0 0.0
    %364 = vmatpush2.msra.mxu0 0.0
    %365 = vmatprep.subr.mxu0 0.0
    %366 = vmatpush2.msra.mxu0 0.0
    %367 = vmatprep.subr.mxu0 0.0
    %368 = vmatpush2.msra.mxu0 0.0
    %369 = vmatprep.subr.mxu0 0.0
    %370 = vmatpush2.msra.mxu0 0.0
    %371 = vmatprep.subr.mxu0 0.0
    %372 = vmatpush2.msra.mxu0 0.0
    %373 = vmatprep.mubr.f32.mxu0 0.0
    %374 = vmatmul.mubr.f32.gmra.mxu0 %v307
    %v375 = vpop.f32.mrf.mxu0
    %v376 = vadd.f32 %v303, %v375
    %v377 = vpop.f32.mrf.mxu0
    %378 = vdwg.mxu0
    %v379 = vxor.u32 %v376, 2147483648
    %v380 = vmul.f32 %v379, 1.442695
    %v381 = vpow.pop %v380
    %v382 = vadd.f32 %v381, 1.0
    %v383 = vrcp.pop %v382
    %v384 = vmul.f32 1.0, %v383
    %v385 = vtanh.pop %v376
    %v386 = vmul.f32 %v384, %v295
    %388 = vrot.lane.b32.xlu0 %v385, 64
    %v389 = vpop.permute.xlu0 %388
    %v391 = vmul.f32 %v384, %v389
    %393 = vrot.lane.b32.xlu0 %v391, 32
    %v394 = vpop.permute.xlu0 %393
    %v396 = vadd.f32 %v386, %v394
    %v397 = vtanh.pop %v396
    %399 = vrot.lane.b32.xlu0 %v397, 64
    %v400 = vpop.permute.xlu0 %399
    %v402 = vmul.f32 %v384, %v400
    %s403 = scalar_lea.vmem [#allocation2], 32
    %v404 = vld [vmem:[%s403] sm:$0xff]
    %406 = vrot.lane.b32.xlu0 %v402, 32
    %v407 = vpop.permute.xlu0 %406
    %v408 = vsel %vm104, %v407, 0
    %410 = vmatprep.subr.mxu0 0.0
    %411 = vmatpush1.msra.mxu0 0.0
    %412 = vmatprep.subr.mxu0 0.0
    %413 = vmatpush1.msra.mxu0 0.0
    %414 = vmatprep.subr.mxu0 0.0
    %415 = vmatpush1.msra.mxu0 0.0
    %416 = vmatprep.subr.mxu0 0.0
    %417 = vmatpush1.msra.mxu0 0.0
    %418 = vmatprep.subr.mxu0 0.0
    %419 = vmatpush1.msra.mxu0 0.0
    %420 = vmatprep.subr.mxu0 0.0
    %421 = vmatpush1.msra.mxu0 0.0
    %422 = vmatprep.subr.mxu0 0.0
    %423 = vmatpush1.msra.mxu0 0.0
    %424 = vmatprep.subr.mxu0 0.0
    %425 = vmatpush1.msra.mxu0 0.0
    %426 = vmatprep.subr.mxu0 0.0
    %427 = vmatpush1.msra.mxu0 0.0
    %428 = vmatprep.subr.mxu0 0.0
    %429 = vmatpush1.msra.mxu0 0.0
    %430 = vmatprep.subr.mxu0 0.0
    %431 = vmatpush1.msra.mxu0 0.0
    %432 = vmatprep.subr.mxu0 0.0
    %433 = vmatpush1.msra.mxu0 0.0
    %434 = vmatprep.subr.mxu0 0.0
    %435 = vmatpush1.msra.mxu0 %v62
    %436 = vmatprep.subr.mxu0 0.0
    %437 = vmatpush1.msra.mxu0 %v61
    %438 = vmatprep.subr.mxu0 0.0
    %439 = vmatpush1.msra.mxu0 %v60
    %440 = vmatprep.subr.mxu0 0.0
    %441 = vmatpush1.msra.mxu0 %v59
    %442 = vmatprep.subr.mxu0 0.0
    %443 = vmatpush2.msra.mxu0 0.0
    %444 = vmatprep.subr.mxu0 0.0
    %445 = vmatpush2.msra.mxu0 0.0
    %446 = vmatprep.subr.mxu0 0.0
    %447 = vmatpush2.msra.mxu0 0.0
    %448 = vmatprep.subr.mxu0 0.0
    %449 = vmatpush2.msra.mxu0 0.0
    %450 = vmatprep.subr.mxu0 0.0
    %451 = vmatpush2.msra.mxu0 0.0
    %452 = vmatprep.subr.mxu0 0.0
    %453 = vmatpush2.msra.mxu0 0.0
    %454 = vmatprep.subr.mxu0 0.0
    %455 = vmatpush2.msra.mxu0 0.0
    %456 = vmatprep.subr.mxu0 0.0
    %457 = vmatpush2.msra.mxu0 0.0
    %458 = vmatprep.subr.mxu0 0.0
    %459 = vmatpush2.msra.mxu0 0.0
    %460 = vmatprep.subr.mxu0 0.0
    %461 = vmatpush2.msra.mxu0 0.0
    %462 = vmatprep.subr.mxu0 0.0
    %463 = vmatpush2.msra.mxu0 0.0
    %464 = vmatprep.subr.mxu0 0.0
    %465 = vmatpush2.msra.mxu0 0.0
    %466 = vmatprep.subr.mxu0 0.0
    %467 = vmatpush2.msra.mxu0 0.0
    %468 = vmatprep.subr.mxu0 0.0
    %469 = vmatpush2.msra.mxu0 0.0
    %470 = vmatprep.subr.mxu0 0.0
    %471 = vmatpush2.msra.mxu0 0.0
    %472 = vmatprep.subr.mxu0 0.0
    %473 = vmatpush2.msra.mxu0 0.0
    %474 = vmatprep.mubr.f32.mxu0 0.0
    %475 = vmatmul.mubr.f32.gmra.mxu0 %v408
    %v476 = vpop.f32.mrf.mxu0
    %v477 = vadd.f32 %v404, %v476
    %v478 = vpop.f32.mrf.mxu0
    %479 = vdwg.mxu0
    %v480 = vxor.u32 %v477, 2147483648
    %v481 = vmul.f32 %v480, 1.442695
    %v482 = vpow.pop %v481
    %v483 = vadd.f32 %v482, 1.0
    %v484 = vrcp.pop %v483
    %v485 = vmul.f32 1.0, %v484
    %v486 = vtanh.pop %v477
    %v487 = vmul.f32 %v485, %v396
    %489 = vrot.lane.b32.xlu0 %v486, 64
    %v490 = vpop.permute.xlu0 %489
    %v492 = vmul.f32 %v485, %v490
    %494 = vrot.lane.b32.xlu0 %v492, 32
    %v495 = vpop.permute.xlu0 %494
    %v497 = vadd.f32 %v487, %v495
    %v498 = vtanh.pop %v497
    %500 = vrot.lane.b32.xlu0 %v498, 64
    %v501 = vpop.permute.xlu0 %500
    %v503 = vmul.f32 %v485, %v501
    %s504 = scalar_lea.vmem [#allocation2], 40
    %v505 = vld [vmem:[%s504] sm:$0xff]
    %507 = vrot.lane.b32.xlu0 %v503, 32
    %v508 = vpop.permute.xlu0 %507
    %v509 = vsel %vm104, %v508, 0
    %511 = vmatprep.subr.mxu0 0.0
    %512 = vmatpush1.msra.mxu0 0.0
    %513 = vmatprep.subr.mxu0 0.0
    %514 = vmatpush1.msra.mxu0 0.0
    %515 = vmatprep.subr.mxu0 0.0
    %516 = vmatpush1.msra.mxu0 0.0
    %517 = vmatprep.subr.mxu0 0.0
    %518 = vmatpush1.msra.mxu0 0.0
    %519 = vmatprep.subr.mxu0 0.0
    %520 = vmatpush1.msra.mxu0 0.0
    %521 = vmatprep.subr.mxu0 0.0
    %522 = vmatpush1.msra.mxu0 0.0
    %523 = vmatprep.subr.mxu0 0.0
    %524 = vmatpush1.msra.mxu0 0.0
    %525 = vmatprep.subr.mxu0 0.0
    %526 = vmatpush1.msra.mxu0 0.0
    %527 = vmatprep.subr.mxu0 0.0
    %528 = vmatpush1.msra.mxu0 0.0
    %529 = vmatprep.subr.mxu0 0.0
    %530 = vmatpush1.msra.mxu0 0.0
    %531 = vmatprep.subr.mxu0 0.0
    %532 = vmatpush1.msra.mxu0 0.0
    %533 = vmatprep.subr.mxu0 0.0
    %534 = vmatpush1.msra.mxu0 0.0
    %535 = vmatprep.subr.mxu0 0.0
    %536 = vmatpush1.msra.mxu0 %v62
    %537 = vmatprep.subr.mxu0 0.0
    %538 = vmatpush1.msra.mxu0 %v61
    %539 = vmatprep.subr.mxu0 0.0
    %540 = vmatpush1.msra.mxu0 %v60
    %541 = vmatprep.subr.mxu0 0.0
    %542 = vmatpush1.msra.mxu0 %v59
    %543 = vmatprep.subr.mxu0 0.0
    %544 = vmatpush2.msra.mxu0 0.0
    %545 = vmatprep.subr.mxu0 0.0
    %546 = vmatpush2.msra.mxu0 0.0
    %547 = vmatprep.subr.mxu0 0.0
    %548 = vmatpush2.msra.mxu0 0.0
    %549 = vmatprep.subr.mxu0 0.0
    %550 = vmatpush2.msra.mxu0 0.0
    %551 = vmatprep.subr.mxu0 0.0
    %552 = vmatpush2.msra.mxu0 0.0
    %553 = vmatprep.subr.mxu0 0.0
    %554 = vmatpush2.msra.mxu0 0.0
    %555 = vmatprep.subr.mxu0 0.0
    %556 = vmatpush2.msra.mxu0 0.0
    %557 = vmatprep.subr.mxu0 0.0
    %558 = vmatpush2.msra.mxu0 0.0
    %559 = vmatprep.subr.mxu0 0.0
    %560 = vmatpush2.msra.mxu0 0.0
    %561 = vmatprep.subr.mxu0 0.0
    %562 = vmatpush2.msra.mxu0 0.0
    %563 = vmatprep.subr.mxu0 0.0
    %564 = vmatpush2.msra.mxu0 0.0
    %565 = vmatprep.subr.mxu0 0.0
    %566 = vmatpush2.msra.mxu0 0.0
    %567 = vmatprep.subr.mxu0 0.0
    %568 = vmatpush2.msra.mxu0 0.0
    %569 = vmatprep.subr.mxu0 0.0
    %570 = vmatpush2.msra.mxu0 0.0
    %571 = vmatprep.subr.mxu0 0.0
    %572 = vmatpush2.msra.mxu0 0.0
    %573 = vmatprep.subr.mxu0 0.0
    %574 = vmatpush2.msra.mxu0 0.0
    %575 = vmatprep.mubr.f32.mxu0 0.0
    %576 = vmatmul.mubr.f32.gmra.mxu0 %v509
    %v577 = vpop.f32.mrf.mxu0
    %v578 = vadd.f32 %v505, %v577
    %v579 = vpop.f32.mrf.mxu0
    %580 = vdwg.mxu0
    %v581 = vxor.u32 %v578, 2147483648
    %v582 = vmul.f32 %v581, 1.442695
    %v583 = vpow.pop %v582
    %v584 = vadd.f32 %v583, 1.0
    %v585 = vrcp.pop %v584
    %v586 = vmul.f32 1.0, %v585
    %v587 = vtanh.pop %v578
    %v588 = vmul.f32 %v586, %v497
    %590 = vrot.lane.b32.xlu0 %v587, 64
    %v591 = vpop.permute.xlu0 %590
    %v593 = vmul.f32 %v586, %v591
    %595 = vrot.lane.b32.xlu0 %v593, 32
    %v596 = vpop.permute.xlu0 %595
    %v598 = vadd.f32 %v588, %v596
    %v599 = vtanh.pop %v598
    %601 = vrot.lane.b32.xlu0 %v599, 64
    %v602 = vpop.permute.xlu0 %601
    %v604 = vmul.f32 %v586, %v602
    %s605 = scalar_lea.vmem [#allocation2], 48
    %v606 = vld [vmem:[%s605] sm:$0xff]
    %608 = vrot.lane.b32.xlu0 %v604, 32
    %v609 = vpop.permute.xlu0 %608
    %v610 = vsel %vm104, %v609, 0
    %612 = vmatprep.subr.mxu0 0.0
    %613 = vmatpush1.msra.mxu0 0.0
    %614 = vmatprep.subr.mxu0 0.0
    %615 = vmatpush1.msra.mxu0 0.0
    %616 = vmatprep.subr.mxu0 0.0
    %617 = vmatpush1.msra.mxu0 0.0
    %618 = vmatprep.subr.mxu0 0.0
    %619 = vmatpush1.msra.mxu0 0.0
    %620 = vmatprep.subr.mxu0 0.0
    %621 = vmatpush1.msra.mxu0 0.0
    %622 = vmatprep.subr.mxu0 0.0
    %623 = vmatpush1.msra.mxu0 0.0
    %624 = vmatprep.subr.mxu0 0.0
    %625 = vmatpush1.msra.mxu0 0.0
    %626 = vmatprep.subr.mxu0 0.0
    %627 = vmatpush1.msra.mxu0 0.0
    %628 = vmatprep.subr.mxu0 0.0
    %629 = vmatpush1.msra.mxu0 0.0
    %630 = vmatprep.subr.mxu0 0.0
    %631 = vmatpush1.msra.mxu0 0.0
    %632 = vmatprep.subr.mxu0 0.0
    %633 = vmatpush1.msra.mxu0 0.0
    %634 = vmatprep.subr.mxu0 0.0
    %635 = vmatpush1.msra.mxu0 0.0
    %636 = vmatprep.subr.mxu0 0.0
    %637 = vmatpush1.msra.mxu0 %v62
    %638 = vmatprep.subr.mxu0 0.0
    %639 = vmatpush1.msra.mxu0 %v61
    %640 = vmatprep.subr.mxu0 0.0
    %641 = vmatpush1.msra.mxu0 %v60
    %642 = vmatprep.subr.mxu0 0.0
    %643 = vmatpush1.msra.mxu0 %v59
    %644 = vmatprep.subr.mxu0 0.0
    %645 = vmatpush2.msra.mxu0 0.0
    %646 = vmatprep.subr.mxu0 0.0
    %647 = vmatpush2.msra.mxu0 0.0
    %648 = vmatprep.subr.mxu0 0.0
    %649 = vmatpush2.msra.mxu0 0.0
    %650 = vmatprep.subr.mxu0 0.0
    %651 = vmatpush2.msra.mxu0 0.0
    %652 = vmatprep.subr.mxu0 0.0
    %653 = vmatpush2.msra.mxu0 0.0
    %654 = vmatprep.subr.mxu0 0.0
    %655 = vmatpush2.msra.mxu0 0.0
    %656 = vmatprep.subr.mxu0 0.0
    %657 = vmatpush2.msra.mxu0 0.0
    %658 = vmatprep.subr.mxu0 0.0
    %659 = vmatpush2.msra.mxu0 0.0
    %660 = vmatprep.subr.mxu0 0.0
    %661 = vmatpush2.msra.mxu0 0.0
    %662 = vmatprep.subr.mxu0 0.0
    %663 = vmatpush2.msra.mxu0 0.0
    %664 = vmatprep.subr.mxu0 0.0
    %665 = vmatpush2.msra.mxu0 0.0
    %666 = vmatprep.subr.mxu0 0.0
    %667 = vmatpush2.msra.mxu0 0.0
    %668 = vmatprep.subr.mxu0 0.0
    %669 = vmatpush2.msra.mxu0 0.0
    %670 = vmatprep.subr.mxu0 0.0
    %671 = vmatpush2.msra.mxu0 0.0
    %672 = vmatprep.subr.mxu0 0.0
    %673 = vmatpush2.msra.mxu0 0.0
    %674 = vmatprep.subr.mxu0 0.0
    %675 = vmatpush2.msra.mxu0 0.0
    %676 = vmatprep.mubr.f32.mxu0 0.0
    %677 = vmatmul.mubr.f32.gmra.mxu0 %v610
    %v678 = vpop.f32.mrf.mxu0
    %v679 = vadd.f32 %v606, %v678
    %v680 = vpop.f32.mrf.mxu0
    %681 = vdwg.mxu0
    %v682 = vxor.u32 %v679, 2147483648
    %v683 = vmul.f32 %v682, 1.442695
    %v684 = vpow.pop %v683
    %v685 = vadd.f32 %v684, 1.0
    %v686 = vrcp.pop %v685
    %v687 = vmul.f32 1.0, %v686
    %v688 = vtanh.pop %v679
    %v689 = vmul.f32 %v687, %v598
    %691 = vrot.lane.b32.xlu0 %v688, 64
    %v692 = vpop.permute.xlu0 %691
    %v694 = vmul.f32 %v687, %v692
    %696 = vrot.lane.b32.xlu0 %v694, 32
    %v697 = vpop.permute.xlu0 %696
    %v699 = vadd.f32 %v689, %v697
    %v700 = vtanh.pop %v699
    %702 = vrot.lane.b32.xlu0 %v700, 64
    %v703 = vpop.permute.xlu0 %702
    %v705 = vmul.f32 %v687, %v703
    %s706 = scalar_lea.vmem [#allocation2], 56
    %v707 = vld [vmem:[%s706] sm:$0xff]
    %709 = vrot.lane.b32.xlu0 %v705, 32
    %v710 = vpop.permute.xlu0 %709
    %v711 = vsel %vm104, %v710, 0
    %713 = vmatprep.subr.mxu0 0.0
    %714 = vmatpush1.msra.mxu0 0.0
    %715 = vmatprep.subr.mxu0 0.0
    %716 = vmatpush1.msra.mxu0 0.0
    %717 = vmatprep.subr.mxu0 0.0
    %718 = vmatpush1.msra.mxu0 0.0
    %719 = vmatprep.subr.mxu0 0.0
    %720 = vmatpush1.msra.mxu0 0.0
    %721 = vmatprep.subr.mxu0 0.0
    %722 = vmatpush1.msra.mxu0 0.0
    %723 = vmatprep.subr.mxu0 0.0
    %724 = vmatpush1.msra.mxu0 0.0
    %725 = vmatprep.subr.mxu0 0.0
    %726 = vmatpush1.msra.mxu0 0.0
    %727 = vmatprep.subr.mxu0 0.0
    %728 = vmatpush1.msra.mxu0 0.0
    %729 = vmatprep.subr.mxu0 0.0
    %730 = vmatpush1.msra.mxu0 0.0
    %731 = vmatprep.subr.mxu0 0.0
    %732 = vmatpush1.msra.mxu0 0.0
    %733 = vmatprep.subr.mxu0 0.0
    %734 = vmatpush1.msra.mxu0 0.0
    %735 = vmatprep.subr.mxu0 0.0
    %736 = vmatpush1.msra.mxu0 0.0
    %737 = vmatprep.subr.mxu0 0.0
    %738 = vmatpush1.msra.mxu0 %v62
    %739 = vmatprep.subr.mxu0 0.0
    %740 = vmatpush1.msra.mxu0 %v61
    %741 = vmatprep.subr.mxu0 0.0
    %742 = vmatpush1.msra.mxu0 %v60
    %743 = vmatprep.subr.mxu0 0.0
    %744 = vmatpush1.msra.mxu0 %v59
    %745 = vmatprep.subr.mxu0 0.0
    %746 = vmatpush2.msra.mxu0 0.0
    %747 = vmatprep.subr.mxu0 0.0
    %748 = vmatpush2.msra.mxu0 0.0
    %749 = vmatprep.subr.mxu0 0.0
    %750 = vmatpush2.msra.mxu0 0.0
    %751 = vmatprep.subr.mxu0 0.0
    %752 = vmatpush2.msra.mxu0 0.0
    %753 = vmatprep.subr.mxu0 0.0
    %754 = vmatpush2.msra.mxu0 0.0
    %755 = vmatprep.subr.mxu0 0.0
    %756 = vmatpush2.msra.mxu0 0.0
    %757 = vmatprep.subr.mxu0 0.0
    %758 = vmatpush2.msra.mxu0 0.0
    %759 = vmatprep.subr.mxu0 0.0
    %760 = vmatpush2.msra.mxu0 0.0
    %761 = vmatprep.subr.mxu0 0.0
    %762 = vmatpush2.msra.mxu0 0.0
    %763 = vmatprep.subr.mxu0 0.0
    %764 = vmatpush2.msra.mxu0 0.0
    %765 = vmatprep.subr.mxu0 0.0
    %766 = vmatpush2.msra.mxu0 0.0
    %767 = vmatprep.subr.mxu0 0.0
    %768 = vmatpush2.msra.mxu0 0.0
    %769 = vmatprep.subr.mxu0 0.0
    %770 = vmatpush2.msra.mxu0 0.0
    %771 = vmatprep.subr.mxu0 0.0
    %772 = vmatpush2.msra.mxu0 0.0
    %773 = vmatprep.subr.mxu0 0.0
    %774 = vmatpush2.msra.mxu0 0.0
    %775 = vmatprep.subr.mxu0 0.0
    %776 = vmatpush2.msra.mxu0 0.0
    %777 = vmatprep.mubr.f32.mxu0 0.0
    %778 = vmatmul.mubr.f32.gmra.mxu0 %v711
    %v779 = vpop.f32.mrf.mxu0
    %v780 = vadd.f32 %v707, %v779
    %v781 = vpop.f32.mrf.mxu0
    %782 = vdwg.mxu0
    %v783 = vxor.u32 %v780, 2147483648
    %v784 = vmul.f32 %v783, 1.442695
    %v785 = vpow.pop %v784
    %v786 = vadd.f32 %v785, 1.0
    %v787 = vrcp.pop %v786
    %v788 = vmul.f32 1.0, %v787
    %v789 = vtanh.pop %v780
    %v790 = vmul.f32 %v788, %v699
    %792 = vrot.lane.b32.xlu0 %v789, 64
    %v793 = vpop.permute.xlu0 %792
    %v795 = vmul.f32 %v788, %v793
    %797 = vrot.lane.b32.xlu0 %v795, 32
    %v798 = vpop.permute.xlu0 %797
    %v800 = vadd.f32 %v790, %v798
    %v801 = vtanh.pop %v800
    %803 = vrot.lane.b32.xlu0 %v801, 64
    %v804 = vpop.permute.xlu0 %803
    %v806 = vmul.f32 %v788, %v804
    %vm807 = vcmask 1048320
    %808 = vst.msk [vmem:[#allocation8 + $0x8] sm:$0xff] %vm807, %v806
    %810 = vrot.lane.b32.xlu0 %v806, 32
    %v811 = vpop.permute.xlu0 %810
    %v812 = vsel %vm104, %v811, 0
    %814 = vmatprep.subr.mxu0 0.0
    %815 = vmatpush1.msra.mxu0 0.0
    %816 = vmatprep.subr.mxu0 0.0
    %817 = vmatpush1.msra.mxu0 0.0
    %818 = vmatprep.subr.mxu0 0.0
    %819 = vmatpush1.msra.mxu0 0.0
    %820 = vmatprep.subr.mxu0 0.0
    %821 = vmatpush1.msra.mxu0 0.0
    %822 = vmatprep.subr.mxu0 0.0
    %823 = vmatpush1.msra.mxu0 0.0
    %824 = vmatprep.subr.mxu0 0.0
    %825 = vmatpush1.msra.mxu0 0.0
    %826 = vmatprep.subr.mxu0 0.0
    %827 = vmatpush1.msra.mxu0 0.0
    %828 = vmatprep.subr.mxu0 0.0
    %829 = vmatpush1.msra.mxu0 0.0
    %830 = vmatprep.subr.mxu0 0.0
    %831 = vmatpush1.msra.mxu0 0.0
    %832 = vmatprep.subr.mxu0 0.0
    %833 = vmatpush1.msra.mxu0 0.0
    %834 = vmatprep.subr.mxu0 0.0
    %835 = vmatpush1.msra.mxu0 0.0
    %836 = vmatprep.subr.mxu0 0.0
    %837 = vmatpush1.msra.mxu0 0.0
    %838 = vmatprep.subr.mxu0 0.0
    %839 = vmatpush1.msra.mxu0 %v66
    %840 = vmatprep.subr.mxu0 0.0
    %841 = vmatpush1.msra.mxu0 %v65
    %842 = vmatprep.subr.mxu0 0.0
    %843 = vmatpush1.msra.mxu0 %v64
    %844 = vmatprep.subr.mxu0 0.0
    %845 = vmatpush1.msra.mxu0 %v63
    %846 = vmatprep.subr.mxu0 0.0
    %847 = vmatpush2.msra.mxu0 0.0
    %848 = vmatprep.subr.mxu0 0.0
    %849 = vmatpush2.msra.mxu0 0.0
    %850 = vmatprep.subr.mxu0 0.0
    %851 = vmatpush2.msra.mxu0 0.0
    %852 = vmatprep.subr.mxu0 0.0
    %853 = vmatpush2.msra.mxu0 0.0
    %854 = vmatprep.subr.mxu0 0.0
    %855 = vmatpush2.msra.mxu0 0.0
    %856 = vmatprep.subr.mxu0 0.0
    %857 = vmatpush2.msra.mxu0 0.0
    %858 = vmatprep.subr.mxu0 0.0
    %859 = vmatpush2.msra.mxu0 0.0
    %860 = vmatprep.subr.mxu0 0.0
    %861 = vmatpush2.msra.mxu0 0.0
    %862 = vmatprep.subr.mxu0 0.0
    %863 = vmatpush2.msra.mxu0 0.0
    %864 = vmatprep.subr.mxu0 0.0
    %865 = vmatpush2.msra.mxu0 0.0
    %866 = vmatprep.subr.mxu0 0.0
    %867 = vmatpush2.msra.mxu0 0.0
    %868 = vmatprep.subr.mxu0 0.0
    %869 = vmatpush2.msra.mxu0 0.0
    %870 = vmatprep.subr.mxu0 0.0
    %871 = vmatpush2.msra.mxu0 0.0
    %872 = vmatprep.subr.mxu0 0.0
    %873 = vmatpush2.msra.mxu0 0.0
    %874 = vmatprep.subr.mxu0 0.0
    %875 = vmatpush2.msra.mxu0 0.0
    %876 = vmatprep.subr.mxu0 0.0
    %877 = vmatpush2.msra.mxu0 0.0
    %878 = vmatprep.mubr.f32.mxu0 0.0
    %879 = vmatmul.mubr.f32.gmra.mxu0 %v812
    %v880 = vpop.f32.mrf.mxu0
    %v881 = vadd.f32 %v72, %v880
    %v882 = vpop.f32.mrf.mxu0
    %883 = vdwg.mxu0
    %v884 = vxor.u32 %v881, 2147483648
    %v885 = vmul.f32 %v884, 1.442695
    %v886 = vpow.pop %v885
    %v887 = vadd.f32 %v886, 1.0
    %v888 = vrcp.pop %v887
    %v889 = vmul.f32 1.0, %v888
    %v890 = vtanh.pop %v881
    %v891 = vmul.f32 %v889, %v800
    %893 = vrot.lane.b32.xlu0 %v890, 64
    %v894 = vpop.permute.xlu0 %893
    %v896 = vmul.f32 %v889, %v894
    %898 = vrot.lane.b32.xlu0 %v896, 32
    %v899 = vpop.permute.xlu0 %898
    %v901 = vadd.f32 %v891, %v899
    %v902 = vtanh.pop %v901
    %904 = vrot.lane.b32.xlu0 %v902, 64
    %v905 = vpop.permute.xlu0 %904
    %v907 = vmul.f32 %v889, %v905
    %909 = vrot.lane.b32.xlu0 %v907, 96
    %v910 = vpop.permute.xlu0 %909
    %vm912 = vcmask 785920
    %913 = vst.msk [vmem:[#allocation8 + $0x8] sm:$0xff] %vm912, %v910
    %914 = vrot.lane.b32.xlu0 %v907, 32
    %v915 = vpop.permute.xlu0 %914
    %v916 = vsel %vm104, %v915, 0
    %918 = vmatprep.subr.mxu0 0.0
    %919 = vmatpush1.msra.mxu0 0.0
    %920 = vmatprep.subr.mxu0 0.0
    %921 = vmatpush1.msra.mxu0 0.0
    %922 = vmatprep.subr.mxu0 0.0
    %923 = vmatpush1.msra.mxu0 0.0
    %924 = vmatprep.subr.mxu0 0.0
    %925 = vmatpush1.msra.mxu0 0.0
    %926 = vmatprep.subr.mxu0 0.0
    %927 = vmatpush1.msra.mxu0 0.0
    %928 = vmatprep.subr.mxu0 0.0
    %929 = vmatpush1.msra.mxu0 0.0
    %930 = vmatprep.subr.mxu0 0.0
    %931 = vmatpush1.msra.mxu0 0.0
    %932 = vmatprep.subr.mxu0 0.0
    %933 = vmatpush1.msra.mxu0 0.0
    %934 = vmatprep.subr.mxu0 0.0
    %935 = vmatpush1.msra.mxu0 0.0
    %936 = vmatprep.subr.mxu0 0.0
    %937 = vmatpush1.msra.mxu0 0.0
    %938 = vmatprep.subr.mxu0 0.0
    %939 = vmatpush1.msra.mxu0 0.0
    %940 = vmatprep.subr.mxu0 0.0
    %941 = vmatpush1.msra.mxu0 0.0
    %942 = vmatprep.subr.mxu0 0.0
    %943 = vmatpush1.msra.mxu0 %v66
    %944 = vmatprep.subr.mxu0 0.0
    %945 = vmatpush1.msra.mxu0 %v65
    %946 = vmatprep.subr.mxu0 0.0
    %947 = vmatpush1.msra.mxu0 %v64
    %948 = vmatprep.subr.mxu0 0.0
    %949 = vmatpush1.msra.mxu0 %v63
    %950 = vmatprep.subr.mxu0 0.0
    %951 = vmatpush2.msra.mxu0 0.0
    %952 = vmatprep.subr.mxu0 0.0
    %953 = vmatpush2.msra.mxu0 0.0
    %954 = vmatprep.subr.mxu0 0.0
    %955 = vmatpush2.msra.mxu0 0.0
    %956 = vmatprep.subr.mxu0 0.0
    %957 = vmatpush2.msra.mxu0 0.0
    %958 = vmatprep.subr.mxu0 0.0
    %959 = vmatpush2.msra.mxu0 0.0
    %960 = vmatprep.subr.mxu0 0.0
    %961 = vmatpush2.msra.mxu0 0.0
    %962 = vmatprep.subr.mxu0 0.0
    %963 = vmatpush2.msra.mxu0 0.0
    %964 = vmatprep.subr.mxu0 0.0
    %965 = vmatpush2.msra.mxu0 0.0
    %966 = vmatprep.subr.mxu0 0.0
    %967 = vmatpush2.msra.mxu0 0.0
    %968 = vmatprep.subr.mxu0 0.0
    %969 = vmatpush2.msra.mxu0 0.0
    %970 = vmatprep.subr.mxu0 0.0
    %971 = vmatpush2.msra.mxu0 0.0
    %972 = vmatprep.subr.mxu0 0.0
    %973 = vmatpush2.msra.mxu0 0.0
    %974 = vmatprep.subr.mxu0 0.0
    %975 = vmatpush2.msra.mxu0 0.0
    %976 = vmatprep.subr.mxu0 0.0
    %977 = vmatpush2.msra.mxu0 0.0
    %978 = vmatprep.subr.mxu0 0.0
    %979 = vmatpush2.msra.mxu0 0.0
    %980 = vmatprep.subr.mxu0 0.0
    %981 = vmatpush2.msra.mxu0 0.0
    %982 = vmatprep.mubr.f32.mxu0 0.0
    %983 = vmatmul.mubr.f32.gmra.mxu0 %v916
    %v984 = vpop.f32.mrf.mxu0
    %v985 = vadd.f32 %v72, %v984
    %v986 = vpop.f32.mrf.mxu0
    %987 = vdwg.mxu0
    %v988 = vxor.u32 %v985, 2147483648
    %v989 = vmul.f32 %v988, 1.442695
    %v990 = vpow.pop %v989
    %v991 = vadd.f32 %v990, 1.0
    %v992 = vrcp.pop %v991
    %v993 = vmul.f32 1.0, %v992
    %v994 = vtanh.pop %v985
    %v995 = vmul.f32 %v993, %v901
    %997 = vrot.lane.b32.xlu0 %v994, 64
    %v998 = vpop.permute.xlu0 %997
    %v1000 = vmul.f32 %v993, %v998
    %1002 = vrot.lane.b32.xlu0 %v1000, 32
    %v1003 = vpop.permute.xlu0 %1002
    %v1005 = vadd.f32 %v995, %v1003
    %v1006 = vtanh.pop %v1005
    %1008 = vrot.lane.b32.xlu0 %v1006, 64
    %v1009 = vpop.permute.xlu0 %1008
    %v1011 = vmul.f32 %v993, %v1009
    %1013 = vrot.lane.b32.xlu0 %v1011, 64
    %v1014 = vpop.permute.xlu0 %1013
    %vm1016 = vcmask 523520
    %1017 = vst.msk [vmem:[#allocation8 + $0x8] sm:$0xff] %vm1016, %v1014
    %1018 = vrot.lane.b32.xlu0 %v1011, 32
    %v1019 = vpop.permute.xlu0 %1018
    %v1020 = vsel %vm104, %v1019, 0
    %1022 = vmatprep.subr.mxu0 0.0
    %1023 = vmatpush1.msra.mxu0 0.0
    %1024 = vmatprep.subr.mxu0 0.0
    %1025 = vmatpush1.msra.mxu0 0.0
    %1026 = vmatprep.subr.mxu0 0.0
    %1027 = vmatpush1.msra.mxu0 0.0
    %1028 = vmatprep.subr.mxu0 0.0
    %1029 = vmatpush1.msra.mxu0 0.0
    %1030 = vmatprep.subr.mxu0 0.0
    %1031 = vmatpush1.msra.mxu0 0.0
    %1032 = vmatprep.subr.mxu0 0.0
    %1033 = vmatpush1.msra.mxu0 0.0
    %1034 = vmatprep.subr.mxu0 0.0
    %1035 = vmatpush1.msra.mxu0 0.0
    %1036 = vmatprep.subr.mxu0 0.0
    %1037 = vmatpush1.msra.mxu0 0.0
    %1038 = vmatprep.subr.mxu0 0.0
    %1039 = vmatpush1.msra.mxu0 0.0
    %1040 = vmatprep.subr.mxu0 0.0
    %1041 = vmatpush1.msra.mxu0 0.0
    %1042 = vmatprep.subr.mxu0 0.0
    %1043 = vmatpush1.msra.mxu0 0.0
    %1044 = vmatprep.subr.mxu0 0.0
    %1045 = vmatpush1.msra.mxu0 0.0
    %1046 = vmatprep.subr.mxu0 0.0
    %1047 = vmatpush1.msra.mxu0 %v66
    %1048 = vmatprep.subr.mxu0 0.0
    %1049 = vmatpush1.msra.mxu0 %v65
    %1050 = vmatprep.subr.mxu0 0.0
    %1051 = vmatpush1.msra.mxu0 %v64
    %1052 = vmatprep.subr.mxu0 0.0
    %1053 = vmatpush1.msra.mxu0 %v63
    %1054 = vmatprep.subr.mxu0 0.0
    %1055 = vmatpush2.msra.mxu0 0.0
    %1056 = vmatprep.subr.mxu0 0.0
    %1057 = vmatpush2.msra.mxu0 0.0
    %1058 = vmatprep.subr.mxu0 0.0
    %1059 = vmatpush2.msra.mxu0 0.0
    %1060 = vmatprep.subr.mxu0 0.0
    %1061 = vmatpush2.msra.mxu0 0.0
    %1062 = vmatprep.subr.mxu0 0.0
    %1063 = vmatpush2.msra.mxu0 0.0
    %1064 = vmatprep.subr.mxu0 0.0
    %1065 = vmatpush2.msra.mxu0 0.0
    %1066 = vmatprep.subr.mxu0 0.0
    %1067 = vmatpush2.msra.mxu0 0.0
    %1068 = vmatprep.subr.mxu0 0.0
    %1069 = vmatpush2.msra.mxu0 0.0
    %1070 = vmatprep.subr.mxu0 0.0
    %1071 = vmatpush2.msra.mxu0 0.0
    %1072 = vmatprep.subr.mxu0 0.0
    %1073 = vmatpush2.msra.mxu0 0.0
    %1074 = vmatprep.subr.mxu0 0.0
    %1075 = vmatpush2.msra.mxu0 0.0
    %1076 = vmatprep.subr.mxu0 0.0
    %1077 = vmatpush2.msra.mxu0 0.0
    %1078 = vmatprep.subr.mxu0 0.0
    %1079 = vmatpush2.msra.mxu0 0.0
    %1080 = vmatprep.subr.mxu0 0.0
    %1081 = vmatpush2.msra.mxu0 0.0
    %1082 = vmatprep.subr.mxu0 0.0
    %1083 = vmatpush2.msra.mxu0 0.0
    %1084 = vmatprep.subr.mxu0 0.0
    %1085 = vmatpush2.msra.mxu0 0.0
    %1086 = vmatprep.mubr.f32.mxu0 0.0
    %1087 = vmatmul.mubr.f32.gmra.mxu0 %v1020
    %v1088 = vpop.f32.mrf.mxu0
    %v1089 = vadd.f32 %v72, %v1088
    %v1090 = vpop.f32.mrf.mxu0
    %1091 = vdwg.mxu0
    %v1092 = vxor.u32 %v1089, 2147483648
    %v1093 = vmul.f32 %v1092, 1.442695
    %v1094 = vpow.pop %v1093
    %v1095 = vadd.f32 %v1094, 1.0
    %v1096 = vrcp.pop %v1095
    %v1097 = vmul.f32 1.0, %v1096
    %v1098 = vtanh.pop %v1089
    %v1099 = vmul.f32 %v1097, %v1005
    %1101 = vrot.lane.b32.xlu0 %v1098, 64
    %v1102 = vpop.permute.xlu0 %1101
    %v1104 = vmul.f32 %v1097, %v1102
    %1106 = vrot.lane.b32.xlu0 %v1104, 32
    %v1107 = vpop.permute.xlu0 %1106
    %v1109 = vadd.f32 %v1099, %v1107
    %v1110 = vtanh.pop %v1109
    %1112 = vrot.lane.b32.xlu0 %v1110, 64
    %v1113 = vpop.permute.xlu0 %1112
    %v1115 = vmul.f32 %v1097, %v1113
    %1117 = vrot.lane.b32.xlu0 %v1115, 32
    %v1118 = vpop.permute.xlu0 %1117
    %1120 = vst.msk [vmem:[#allocation8 + $0x8] sm:$0xff] %vm104, %v1118
    %v1121 = vsel %vm104, %v1118, 0
    %1123 = vmatprep.subr.mxu0 0.0
    %1124 = vmatpush1.msra.mxu0 0.0
    %1125 = vmatprep.subr.mxu0 0.0
    %1126 = vmatpush1.msra.mxu0 0.0
    %1127 = vmatprep.subr.mxu0 0.0
    %1128 = vmatpush1.msra.mxu0 0.0
    %1129 = vmatprep.subr.mxu0 0.0
    %1130 = vmatpush1.msra.mxu0 0.0
    %1131 = vmatprep.subr.mxu0 0.0
    %1132 = vmatpush1.msra.mxu0 0.0
    %1133 = vmatprep.subr.mxu0 0.0
    %1134 = vmatpush1.msra.mxu0 0.0
    %1135 = vmatprep.subr.mxu0 0.0
    %1136 = vmatpush1.msra.mxu0 0.0
    %1137 = vmatprep.subr.mxu0 0.0
    %1138 = vmatpush1.msra.mxu0 0.0
    %1139 = vmatprep.subr.mxu0 0.0
    %1140 = vmatpush1.msra.mxu0 0.0
    %1141 = vmatprep.subr.mxu0 0.0
    %1142 = vmatpush1.msra.mxu0 0.0
    %1143 = vmatprep.subr.mxu0 0.0
    %1144 = vmatpush1.msra.mxu0 0.0
    %1145 = vmatprep.subr.mxu0 0.0
    %1146 = vmatpush1.msra.mxu0 0.0
    %1147 = vmatprep.subr.mxu0 0.0
    %1148 = vmatpush1.msra.mxu0 %v66
    %1149 = vmatprep.subr.mxu0 0.0
    %1150 = vmatpush1.msra.mxu0 %v65
    %1151 = vmatprep.subr.mxu0 0.0
    %1152 = vmatpush1.msra.mxu0 %v64
    %1153 = vmatprep.subr.mxu0 0.0
    %1154 = vmatpush1.msra.mxu0 %v63
    %1155 = vmatprep.subr.mxu0 0.0
    %1156 = vmatpush2.msra.mxu0 0.0
    %1157 = vmatprep.subr.mxu0 0.0
    %1158 = vmatpush2.msra.mxu0 0.0
    %1159 = vmatprep.subr.mxu0 0.0
    %1160 = vmatpush2.msra.mxu0 0.0
    %1161 = vmatprep.subr.mxu0 0.0
    %1162 = vmatpush2.msra.mxu0 0.0
    %1163 = vmatprep.subr.mxu0 0.0
    %1164 = vmatpush2.msra.mxu0 0.0
    %1165 = vmatprep.subr.mxu0 0.0
    %1166 = vmatpush2.msra.mxu0 0.0
    %1167 = vmatprep.subr.mxu0 0.0
    %1168 = vmatpush2.msra.mxu0 0.0
    %1169 = vmatprep.subr.mxu0 0.0
    %1170 = vmatpush2.msra.mxu0 0.0
    %1171 = vmatprep.subr.mxu0 0.0
    %1172 = vmatpush2.msra.mxu0 0.0
    %1173 = vmatprep.subr.mxu0 0.0
    %1174 = vmatpush2.msra.mxu0 0.0
    %1175 = vmatprep.subr.mxu0 0.0
    %1176 = vmatpush2.msra.mxu0 0.0
    %1177 = vmatprep.subr.mxu0 0.0
    %1178 = vmatpush2.msra.mxu0 0.0
    %1179 = vmatprep.subr.mxu0 0.0
    %1180 = vmatpush2.msra.mxu0 0.0
    %1181 = vmatprep.subr.mxu0 0.0
    %1182 = vmatpush2.msra.mxu0 0.0
    %1183 = vmatprep.subr.mxu0 0.0
    %1184 = vmatpush2.msra.mxu0 0.0
    %1185 = vmatprep.subr.mxu0 0.0
    %1186 = vmatpush2.msra.mxu0 0.0
    %1187 = vmatprep.mubr.f32.mxu0 0.0
    %1188 = vmatmul.mubr.f32.gmra.mxu0 %v1121
    %v1189 = vpop.f32.mrf.mxu0
    %v1190 = vadd.f32 %v72, %v1189
    %v1191 = vpop.f32.mrf.mxu0
    %1192 = vdwg.mxu0
    %v1193 = vxor.u32 %v1190, 2147483648
    %v1194 = vmul.f32 %v1193, 1.442695
    %v1195 = vpow.pop %v1194
    %v1196 = vadd.f32 %v1195, 1.0
    %v1197 = vrcp.pop %v1196
    %v1198 = vmul.f32 1.0, %v1197
    %v1199 = vtanh.pop %v1190
    %v1200 = vmul.f32 %v1198, %v1109
    %1202 = vrot.lane.b32.xlu0 %v1199, 64
    %v1203 = vpop.permute.xlu0 %1202
    %v1205 = vmul.f32 %v1198, %v1203
    %1207 = vrot.lane.b32.xlu0 %v1205, 32
    %v1208 = vpop.permute.xlu0 %1207
    %v1210 = vadd.f32 %v1200, %v1208
    %v1211 = vtanh.pop %v1210
    %1213 = vrot.lane.b32.xlu0 %v1211, 64
    %v1214 = vpop.permute.xlu0 %1213
    %v1216 = vmul.f32 %v1198, %v1214
    %1217 = vst.msk [vmem:[#allocation8] sm:$0xff] %vm807, %v1216
    %1219 = vrot.lane.b32.xlu0 %v1216, 32
    %v1220 = vpop.permute.xlu0 %1219
    %v1221 = vsel %vm104, %v1220, 0
    %1223 = vmatprep.subr.mxu0 0.0
    %1224 = vmatpush1.msra.mxu0 0.0
    %1225 = vmatprep.subr.mxu0 0.0
    %1226 = vmatpush1.msra.mxu0 0.0
    %1227 = vmatprep.subr.mxu0 0.0
    %1228 = vmatpush1.msra.mxu0 0.0
    %1229 = vmatprep.subr.mxu0 0.0
    %1230 = vmatpush1.msra.mxu0 0.0
    %1231 = vmatprep.subr.mxu0 0.0
    %1232 = vmatpush1.msra.mxu0 0.0
    %1233 = vmatprep.subr.mxu0 0.0
    %1234 = vmatpush1.msra.mxu0 0.0
    %1235 = vmatprep.subr.mxu0 0.0
    %1236 = vmatpush1.msra.mxu0 0.0
    %1237 = vmatprep.subr.mxu0 0.0
    %1238 = vmatpush1.msra.mxu0 0.0
    %1239 = vmatprep.subr.mxu0 0.0
    %1240 = vmatpush1.msra.mxu0 0.0
    %1241 = vmatprep.subr.mxu0 0.0
    %1242 = vmatpush1.msra.mxu0 0.0
    %1243 = vmatprep.subr.mxu0 0.0
    %1244 = vmatpush1.msra.mxu0 0.0
    %1245 = vmatprep.subr.mxu0 0.0
    %1246 = vmatpush1.msra.mxu0 0.0
    %1247 = vmatprep.subr.mxu0 0.0
    %1248 = vmatpush1.msra.mxu0 %v66
    %1249 = vmatprep.subr.mxu0 0.0
    %1250 = vmatpush1.msra.mxu0 %v65
    %1251 = vmatprep.subr.mxu0 0.0
    %1252 = vmatpush1.msra.mxu0 %v64
    %1253 = vmatprep.subr.mxu0 0.0
    %1254 = vmatpush1.msra.mxu0 %v63
    %1255 = vmatprep.subr.mxu0 0.0
    %1256 = vmatpush2.msra.mxu0 0.0
    %1257 = vmatprep.subr.mxu0 0.0
    %1258 = vmatpush2.msra.mxu0 0.0
    %1259 = vmatprep.subr.mxu0 0.0
    %1260 = vmatpush2.msra.mxu0 0.0
    %1261 = vmatprep.subr.mxu0 0.0
    %1262 = vmatpush2.msra.mxu0 0.0
    %1263 = vmatprep.subr.mxu0 0.0
    %1264 = vmatpush2.msra.mxu0 0.0
    %1265 = vmatprep.subr.mxu0 0.0
    %1266 = vmatpush2.msra.mxu0 0.0
    %1267 = vmatprep.subr.mxu0 0.0
    %1268 = vmatpush2.msra.mxu0 0.0
    %1269 = vmatprep.subr.mxu0 0.0
    %1270 = vmatpush2.msra.mxu0 0.0
    %1271 = vmatprep.subr.mxu0 0.0
    %1272 = vmatpush2.msra.mxu0 0.0
    %1273 = vmatprep.subr.mxu0 0.0
    %1274 = vmatpush2.msra.mxu0 0.0
    %1275 = vmatprep.subr.mxu0 0.0
    %1276 = vmatpush2.msra.mxu0 0.0
    %1277 = vmatprep.subr.mxu0 0.0
    %1278 = vmatpush2.msra.mxu0 0.0
    %1279 = vmatprep.subr.mxu0 0.0
    %1280 = vmatpush2.msra.mxu0 0.0
    %1281 = vmatprep.subr.mxu0 0.0
    %1282 = vmatpush2.msra.mxu0 0.0
    %1283 = vmatprep.subr.mxu0 0.0
    %1284 = vmatpush2.msra.mxu0 0.0
    %1285 = vmatprep.subr.mxu0 0.0
    %1286 = vmatpush2.msra.mxu0 0.0
    %1287 = vmatprep.mubr.f32.mxu0 0.0
    %1288 = vmatmul.mubr.f32.gmra.mxu0 %v1221
    %v1289 = vpop.f32.mrf.mxu0
    %v1290 = vadd.f32 %v72, %v1289
    %v1291 = vpop.f32.mrf.mxu0
    %1292 = vdwg.mxu0
    %v1293 = vxor.u32 %v1290, 2147483648
    %v1294 = vmul.f32 %v1293, 1.442695
    %v1295 = vpow.pop %v1294
    %v1296 = vadd.f32 %v1295, 1.0
    %v1297 = vrcp.pop %v1296
    %v1298 = vmul.f32 1.0, %v1297
    %v1299 = vtanh.pop %v1290
    %v1300 = vmul.f32 %v1298, %v1210
    %1302 = vrot.lane.b32.xlu0 %v1299, 64
    %v1303 = vpop.permute.xlu0 %1302
    %v1305 = vmul.f32 %v1298, %v1303
    %1307 = vrot.lane.b32.xlu0 %v1305, 32
    %v1308 = vpop.permute.xlu0 %1307
    %v1310 = vadd.f32 %v1300, %v1308
    %v1311 = vtanh.pop %v1310
    %1313 = vrot.lane.b32.xlu0 %v1311, 64
    %v1314 = vpop.permute.xlu0 %1313
    %v1316 = vmul.f32 %v1298, %v1314
    %1318 = vrot.lane.b32.xlu0 %v1316, 96
    %v1319 = vpop.permute.xlu0 %1318
    %1321 = vst.msk [vmem:[#allocation8] sm:$0xff] %vm912, %v1319
    %1322 = vrot.lane.b32.xlu0 %v1316, 32
    %v1323 = vpop.permute.xlu0 %1322
    %v1324 = vsel %vm104, %v1323, 0
    %1326 = vmatprep.subr.mxu0 0.0
    %1327 = vmatpush1.msra.mxu0 0.0
    %1328 = vmatprep.subr.mxu0 0.0
    %1329 = vmatpush1.msra.mxu0 0.0
    %1330 = vmatprep.subr.mxu0 0.0
    %1331 = vmatpush1.msra.mxu0 0.0
    %1332 = vmatprep.subr.mxu0 0.0
    %1333 = vmatpush1.msra.mxu0 0.0
    %1334 = vmatprep.subr.mxu0 0.0
    %1335 = vmatpush1.msra.mxu0 0.0
    %1336 = vmatprep.subr.mxu0 0.0
    %1337 = vmatpush1.msra.mxu0 0.0
    %1338 = vmatprep.subr.mxu0 0.0
    %1339 = vmatpush1.msra.mxu0 0.0
    %1340 = vmatprep.subr.mxu0 0.0
    %1341 = vmatpush1.msra.mxu0 0.0
    %1342 = vmatprep.subr.mxu0 0.0
    %1343 = vmatpush1.msra.mxu0 0.0
    %1344 = vmatprep.subr.mxu0 0.0
    %1345 = vmatpush1.msra.mxu0 0.0
    %1346 = vmatprep.subr.mxu0 0.0
    %1347 = vmatpush1.msra.mxu0 0.0
    %1348 = vmatprep.subr.mxu0 0.0
    %1349 = vmatpush1.msra.mxu0 0.0
    %1350 = vmatprep.subr.mxu0 0.0
    %1351 = vmatpush1.msra.mxu0 %v66
    %1352 = vmatprep.subr.mxu0 0.0
    %1353 = vmatpush1.msra.mxu0 %v65
    %1354 = vmatprep.subr.mxu0 0.0
    %1355 = vmatpush1.msra.mxu0 %v64
    %1356 = vmatprep.subr.mxu0 0.0
    %1357 = vmatpush1.msra.mxu0 %v63
    %1358 = vmatprep.subr.mxu0 0.0
    %1359 = vmatpush2.msra.mxu0 0.0
    %1360 = vmatprep.subr.mxu0 0.0
    %1361 = vmatpush2.msra.mxu0 0.0
    %1362 = vmatprep.subr.mxu0 0.0
    %1363 = vmatpush2.msra.mxu0 0.0
    %1364 = vmatprep.subr.mxu0 0.0
    %1365 = vmatpush2.msra.mxu0 0.0
    %1366 = vmatprep.subr.mxu0 0.0
    %1367 = vmatpush2.msra.mxu0 0.0
    %1368 = vmatprep.subr.mxu0 0.0
    %1369 = vmatpush2.msra.mxu0 0.0
    %1370 = vmatprep.subr.mxu0 0.0
    %1371 = vmatpush2.msra.mxu0 0.0
    %1372 = vmatprep.subr.mxu0 0.0
    %1373 = vmatpush2.msra.mxu0 0.0
    %1374 = vmatprep.subr.mxu0 0.0
    %1375 = vmatpush2.msra.mxu0 0.0
    %1376 = vmatprep.subr.mxu0 0.0
    %1377 = vmatpush2.msra.mxu0 0.0
    %1378 = vmatprep.subr.mxu0 0.0
    %1379 = vmatpush2.msra.mxu0 0.0
    %1380 = vmatprep.subr.mxu0 0.0
    %1381 = vmatpush2.msra.mxu0 0.0
    %1382 = vmatprep.subr.mxu0 0.0
    %1383 = vmatpush2.msra.mxu0 0.0
    %1384 = vmatprep.subr.mxu0 0.0
    %1385 = vmatpush2.msra.mxu0 0.0
    %1386 = vmatprep.subr.mxu0 0.0
    %1387 = vmatpush2.msra.mxu0 0.0
    %1388 = vmatprep.subr.mxu0 0.0
    %1389 = vmatpush2.msra.mxu0 0.0
    %1390 = vmatprep.mubr.f32.mxu0 0.0
    %1391 = vmatmul.mubr.f32.gmra.mxu0 %v1324
    %v1392 = vpop.f32.mrf.mxu0
    %v1393 = vadd.f32 %v72, %v1392
    %v1394 = vpop.f32.mrf.mxu0
    %1395 = vdwg.mxu0
    %v1396 = vxor.u32 %v1393, 2147483648
    %v1397 = vmul.f32 %v1396, 1.442695
    %v1398 = vpow.pop %v1397
    %v1399 = vadd.f32 %v1398, 1.0
    %v1400 = vrcp.pop %v1399
    %v1401 = vmul.f32 1.0, %v1400
    %v1402 = vtanh.pop %v1393
    %v1403 = vmul.f32 %v1401, %v1310
    %1405 = vrot.lane.b32.xlu0 %v1402, 64
    %v1406 = vpop.permute.xlu0 %1405
    %v1408 = vmul.f32 %v1401, %v1406
    %1410 = vrot.lane.b32.xlu0 %v1408, 32
    %v1411 = vpop.permute.xlu0 %1410
    %v1413 = vadd.f32 %v1403, %v1411
    %v1414 = vtanh.pop %v1413
    %1416 = vrot.lane.b32.xlu0 %v1414, 64
    %v1417 = vpop.permute.xlu0 %1416
    %v1419 = vmul.f32 %v1401, %v1417
    %1421 = vrot.lane.b32.xlu0 %v1419, 64
    %v1422 = vpop.permute.xlu0 %1421
    %1424 = vst.msk [vmem:[#allocation8] sm:$0xff] %vm1016, %v1422
    %1425 = vrot.lane.b32.xlu0 %v1419, 32
    %v1426 = vpop.permute.xlu0 %1425
    %v1427 = vsel %vm104, %v1426, 0
    %1429 = vmatprep.subr.mxu0 0.0
    %1430 = vmatpush1.msra.mxu0 0.0
    %1431 = vmatprep.subr.mxu0 0.0
    %1432 = vmatpush1.msra.mxu0 0.0
    %1433 = vmatprep.subr.mxu0 0.0
    %1434 = vmatpush1.msra.mxu0 0.0
    %1435 = vmatprep.subr.mxu0 0.0
    %1436 = vmatpush1.msra.mxu0 0.0
    %1437 = vmatprep.subr.mxu0 0.0
    %1438 = vmatpush1.msra.mxu0 0.0
    %1439 = vmatprep.subr.mxu0 0.0
    %1440 = vmatpush1.msra.mxu0 0.0
    %1441 = vmatprep.subr.mxu0 0.0
    %1442 = vmatpush1.msra.mxu0 0.0
    %1443 = vmatprep.subr.mxu0 0.0
    %1444 = vmatpush1.msra.mxu0 0.0
    %1445 = vmatprep.subr.mxu0 0.0
    %1446 = vmatpush1.msra.mxu0 0.0
    %1447 = vmatprep.subr.mxu0 0.0
    %1448 = vmatpush1.msra.mxu0 0.0
    %1449 = vmatprep.subr.mxu0 0.0
    %1450 = vmatpush1.msra.mxu0 0.0
    %1451 = vmatprep.subr.mxu0 0.0
    %1452 = vmatpush1.msra.mxu0 0.0
    %1453 = vmatprep.subr.mxu0 0.0
    %1454 = vmatpush1.msra.mxu0 %v66
    %1455 = vmatprep.subr.mxu0 0.0
    %1456 = vmatpush1.msra.mxu0 %v65
    %1457 = vmatprep.subr.mxu0 0.0
    %1458 = vmatpush1.msra.mxu0 %v64
    %1459 = vmatprep.subr.mxu0 0.0
    %1460 = vmatpush1.msra.mxu0 %v63
    %1461 = vmatprep.subr.mxu0 0.0
    %1462 = vmatpush2.msra.mxu0 0.0
    %1463 = vmatprep.subr.mxu0 0.0
    %1464 = vmatpush2.msra.mxu0 0.0
    %1465 = vmatprep.subr.mxu0 0.0
    %1466 = vmatpush2.msra.mxu0 0.0
    %1467 = vmatprep.subr.mxu0 0.0
    %1468 = vmatpush2.msra.mxu0 0.0
    %1469 = vmatprep.subr.mxu0 0.0
    %1470 = vmatpush2.msra.mxu0 0.0
    %1471 = vmatprep.subr.mxu0 0.0
    %1472 = vmatpush2.msra.mxu0 0.0
    %1473 = vmatprep.subr.mxu0 0.0
    %1474 = vmatpush2.msra.mxu0 0.0
    %1475 = vmatprep.subr.mxu0 0.0
    %1476 = vmatpush2.msra.mxu0 0.0
    %1477 = vmatprep.subr.mxu0 0.0
    %1478 = vmatpush2.msra.mxu0 0.0
    %1479 = vmatprep.subr.mxu0 0.0
    %1480 = vmatpush2.msra.mxu0 0.0
    %1481 = vmatprep.subr.mxu0 0.0
    %1482 = vmatpush2.msra.mxu0 0.0
    %1483 = vmatprep.subr.mxu0 0.0
    %1484 = vmatpush2.msra.mxu0 0.0
    %1485 = vmatprep.subr.mxu0 0.0
    %1486 = vmatpush2.msra.mxu0 0.0
    %1487 = vmatprep.subr.mxu0 0.0
    %1488 = vmatpush2.msra.mxu0 0.0
    %1489 = vmatprep.subr.mxu0 0.0
    %1490 = vmatpush2.msra.mxu0 0.0
    %1491 = vmatprep.subr.mxu0 0.0
    %1492 = vmatpush2.msra.mxu0 0.0
    %1493 = vmatprep.mubr.f32.mxu0 0.0
    %1494 = vmatmul.mubr.f32.gmra.mxu0 %v1427
    %v1495 = vpop.f32.mrf.mxu0
    %v1496 = vadd.f32 %v72, %v1495
    %v1497 = vpop.f32.mrf.mxu0
    %1498 = vdwg.mxu0
    %v1499 = vxor.u32 %v1496, 2147483648
    %v1500 = vmul.f32 %v1499, 1.442695
    %v1501 = vpow.pop %v1500
    %v1502 = vadd.f32 %v1501, 1.0
    %v1503 = vrcp.pop %v1502
    %v1504 = vmul.f32 1.0, %v1503
    %v1505 = vtanh.pop %v1496
    %v1506 = vmul.f32 %v1504, %v1413
    %1508 = vrot.lane.b32.xlu0 %v1505, 64
    %v1509 = vpop.permute.xlu0 %1508
    %v1511 = vmul.f32 %v1504, %v1509
    %1513 = vrot.lane.b32.xlu0 %v1511, 32
    %v1514 = vpop.permute.xlu0 %1513
    %v1516 = vadd.f32 %v1506, %v1514
    %v1517 = vtanh.pop %v1516
    %1519 = vrot.lane.b32.xlu0 %v1517, 64
    %v1520 = vpop.permute.xlu0 %1519
    %v1522 = vmul.f32 %v1504, %v1520
    %1524 = vrot.lane.b32.xlu0 %v1522, 32
    %v1525 = vpop.permute.xlu0 %1524
    %1527 = vst.msk [vmem:[#allocation8] sm:$0xff] %vm104, %v1525
    // Predicated region
    $region30: #{tpu_custom_call.1} parent=1 // pred_check
      _
    $region31: #{tpu_custom_call.1} parent=1 // pred_check_branch
      %1529 = sbr.rel (0) target = $region33
    $region32: #{tpu_custom_call.1} parent=1 // pred_region
      %s1531 = ssub.s32 256, 256
      %1532 = vsyncadd [#allocation4], %s1531
      %s1534 = sshll.u32 [#allocation8], 4
      %s1535 = int_to_ptr.vmem [resolvable:$true] %s1534
      %1537 = dma.vmem_to_hbm [thread:$0]  %s1535, 256, %s4, [#allocation4]
    $region33: #{tpu_custom_call.1} parent=1 // pred_fallthru
      _
    // Predicated region
    $region34: #{tpu_custom_call.1} parent=1 // pred_check
      _
    $region35: #{tpu_custom_call.1} parent=1 // pred_check_branch
      %1539 = sbr.rel (0) target = $region37
    $region36: #{tpu_custom_call.1} parent=1 // pred_region
      %1540 = dma.done [#allocation4], 256
    $region37: #{tpu_custom_call.1} parent=1 // pred_fallthru
      _
    %1541 = vsyncpa [#allocation3], 1
    %1542 = vsyncpa [#allocation6], 1
    %1543 = vsyncpa [#allocation4], 1

</llo_original>
